<compile_context>
chip_gen: v5e
topology: v5e:2x2
jax: 0.10.0
libtpu: 0.0.40
codegen_flags: <defaults>
</compile_context>

<pallas_src>
import functools
import numpy as np
import jax
import jax.numpy as jnp
from jax.experimental import pallas as pl
from jax.experimental.pallas import tpu as pltpu


def _lstm_model_kernel(
    x_ref, encw_ref, encb_ref, wfused_ref, bfused_ref,
    h0_ref, c0_ref, decw_ref, decb_ref,
    dec_ref, hn_ref, cn_ref,
    *, nlayers, hid, tchunk, batch,
):
    chunk = pl.program_id(0)
    B, H = batch, hid

    # Use the resident h_n / c_n output blocks as the carry across chunks;
    # initialize them from (h0, c0) on the first chunk only.
    @pl.when(chunk == 0)
    def _():
        hn_ref[...] = h0_ref[...]
        cn_ref[...] = c0_ref[...]

    # --- encoder: one bf16 matmul for the whole time chunk (not per step) ---
    emb = (
        jnp.dot(x_ref[...].astype(jnp.bfloat16), encw_ref[...],
                preferred_element_type=jnp.float32)
        + encb_ref[...]
    )  # (TC*B, H) f32

    # f32 carries, read from the resident output blocks (tiny: L x (B,H)).
    h = [hn_ref[l] for l in range(nlayers)]
    c = [cn_ref[l] for l in range(nlayers)]

    # --- recurrence: one fused (B,2H)@(2H,4H) bf16 matmul per cell ---
    # TODO(synk): for large time chunks switch to lax.fori_loop(unroll=k);
    # full Python unrolling is fine at TC=8.
    tops = []
    for t in range(tchunk):
        inp = emb[t * B:(t + 1) * B, :]
        for l in range(nlayers):
            z = jnp.concatenate([inp, h[l]], axis=1).astype(jnp.bfloat16)  # (B, 2H)
            # weights/bias are loaded from VMEM here (not hoisted into vregs);
            # bias is a (1, 4H) row broadcast over B.  PyTorch gate order i,f,g,o.
            pre = (
                jnp.dot(z, wfused_ref[l], preferred_element_type=jnp.float32)
                + bfused_ref[l]
            )  # (B, 4H) f32
            i_g = jax.nn.sigmoid(pre[:, 0 * H:1 * H])
            f_g = jax.nn.sigmoid(pre[:, 1 * H:2 * H])
            g_g = jnp.tanh(pre[:, 2 * H:3 * H])
            o_g = jax.nn.sigmoid(pre[:, 3 * H:4 * H])
            c[l] = f_g * c[l] + i_g * g_g
            h[l] = o_g * jnp.tanh(c[l])
            inp = h[l]
        tops.append(inp)  # keep the top-layer h in registers (no VMEM scratch)

    # write the carry back once per chunk
    for l in range(nlayers):
        hn_ref[l] = h[l]
        cn_ref[l] = c[l]

    # --- decoder: one lane-dense bf16 matmul for the whole chunk ---
    # decw/decb/dec_ref are padded to a multiple of 128 lanes -> unmasked vst.
    top = jnp.concatenate(tops, axis=0).astype(jnp.bfloat16)  # (TC*B, H)
    dec_ref[...] = (
        jnp.dot(top, decw_ref[...], preferred_element_type=jnp.float32)
        + decb_ref[...]
    ).astype(dec_ref.dtype)


def model_server_forward(x, h0, c0, params, *, time_chunk=None):
    """Fused encoder -> stacked LSTM -> decoder forward pass on TPU.

    x: (T, B, E), h0/c0: (L, B, H). Returns (decoded (T,B,D), (h_n, c_n)).
    """
    T, B, E = x.shape
    L, _, H = h0.shape
    D = params["dec_w_t"].shape[1]

    TC = T if time_chunk is None else time_chunk
    assert T % TC == 0, "T must be divisible by the time chunk"
    num_chunks = T // TC

    # Lane-dense decoder output: pad D up to a multiple of 128 lanes.
    Dp = max(128, ((D + 127) // 128) * 128)
    dec_w_p = jnp.pad(params["dec_w_t"], ((0, 0), (0, Dp - D))).astype(jnp.bfloat16)
    dec_b_p = jnp.pad(params["dec_b"], ((0, 0), (0, Dp - D)))  # f32

    # Fuse LSTM weights once, outside the kernel:
    #   W_fused[l] = [W_ih^T ; W_hh^T]  -> (2H, 4H), lanes ordered [i|f|g|o]
    #   b_fused[l] = b_ih + b_hh        -> (1, 4H)
    w_fused = jnp.concatenate([params["w_ih_t"], params["w_hh_t"]],
                              axis=1).astype(jnp.bfloat16)        # (L, 2H, 4H)
    b_fused = params["b_ih"] + params["b_hh"]                      # (L, 1, 4H) f32
    enc_w = params["enc_w_t"].astype(jnp.bfloat16)                 # (E, H)

    # Flatten time*batch for the encoder / decoder slabs (same as the module's
    # .view(-1, enc_inp_size)); the kernel then only slices rows per step.
    x_flat = x.reshape(T * B, E)

    kernel = functools.partial(
        _lstm_model_kernel, nlayers=L, hid=H, tchunk=TC, batch=B)

    full = lambda shape: pl.BlockSpec(shape, lambda c, s=len(shape): (0,) * s)

    dec_flat, h_n, c_n = pl.pallas_call(
        kernel,
        out_shape=(
            jax.ShapeDtypeStruct((T * B, Dp), jnp.float32),
            jax.ShapeDtypeStruct((L, B, H), jnp.float32),
            jax.ShapeDtypeStruct((L, B, H), jnp.float32),
        ),
        grid_spec=pltpu.PrefetchScalarGridSpec(
            num_scalar_prefetch=0,
            grid=(num_chunks,),
            in_specs=[
                pl.BlockSpec((TC * B, E), lambda c: (c, 0)),      # x chunk
                full((E, H)),                                      # enc W^T (bf16)
                full((1, H)),                                      # enc b   (f32)
                full((L, 2 * H, 4 * H)),                           # fused LSTM W (bf16)
                full((L, 1, 4 * H)),                               # fused LSTM b (f32)
                full((L, B, H)),                                   # h0
                full((L, B, H)),                                   # c0
                full((H, Dp)),                                     # dec W^T (bf16, padded)
                full((1, Dp)),                                     # dec b   (f32, padded)
            ],
            out_specs=[
                pl.BlockSpec((TC * B, Dp), lambda c: (c, 0)),      # decoded chunk
                full((L, B, H)),                                   # h_n (resident carry)
                full((L, B, H)),                                   # c_n (resident carry)
            ],
        ),
        compiler_params=pltpu.CompilerParams(
            dimension_semantics=("arbitrary",),                    # time is sequential
        ),
    )(
        x_flat,
        enc_w, params["enc_b"],
        w_fused, b_fused,
        h0, c0,
        dec_w_p, dec_b_p,
    )

    decoded = dec_flat.reshape(T, B, Dp)[:, :, :D]
    return decoded, (h_n, c_n)


def make_params(key, enc_inp_size, rnn_hid_size, dec_out_size, nlayers):
    """Deterministic synthetic parameters mirroring the PyTorch init shapes.

    LSTM weights are stored pre-transposed with gate-major columns [i|f|g|o]:
      w_ih_t[l] = W_ih[l].T  (H, 4H),  w_hh_t[l] = W_hh[l].T  (H, 4H).
    """
    E, H, D, L = enc_inp_size, rnn_hid_size, dec_out_size, nlayers
    ks = jax.random.split(key, 8)
    initrange = 0.1
    stdv = 1.0 / np.sqrt(H)
    u = lambda k, shape, lo, hi: jax.random.uniform(
        k, shape, jnp.float32, minval=lo, maxval=hi)
    return {
        "enc_w_t": u(ks[0], (E, H), -initrange, initrange),
        "enc_b":   u(ks[1], (1, H), -stdv, stdv),
        "w_ih_t":  u(ks[2], (L, H, 4 * H), -stdv, stdv),
        "w_hh_t":  u(ks[3], (L, H, 4 * H), -stdv, stdv),
        "b_ih":    u(ks[4], (L, 1, 4 * H), -stdv, stdv),
        "b_hh":    u(ks[5], (L, 1, 4 * H), -stdv, stdv),
        "dec_w_t": u(ks[6], (H, D), -initrange, initrange),
        "dec_b":   jnp.zeros((1, D), jnp.float32),
    }


def reference_forward(x, h0, c0, p):
    """Pure-JAX reference of the same forward pass (bf16 matmuls, f32 carry)."""
    T, B, E = x.shape
    L, _, H = h0.shape
    bf, f32 = jnp.bfloat16, jnp.float32
    enc_w = p["enc_w_t"].astype(bf)
    w_f = jnp.concatenate([p["w_ih_t"], p["w_hh_t"]], axis=1).astype(bf)
    b_f = p["b_ih"] + p["b_hh"]
    dec_w = p["dec_w_t"].astype(bf)

    emb = (jnp.dot(x.reshape(-1, E).astype(bf), enc_w,
                   preferred_element_type=f32) + p["enc_b"]).reshape(T, B, H)
    h = [h0[l] for l in range(L)]
    c = [c0[l] for l in range(L)]
    outs = []
    for t in range(T):
        inp = emb[t]
        for l in range(L):
            z = jnp.concatenate([inp, h[l]], axis=1).astype(bf)
            pre = jnp.dot(z, w_f[l], preferred_element_type=f32) + b_f[l]
            i_g = jax.nn.sigmoid(pre[:, 0 * H:1 * H])
            f_g = jax.nn.sigmoid(pre[:, 1 * H:2 * H])
            g_g = jnp.tanh(pre[:, 2 * H:3 * H])
            o_g = jax.nn.sigmoid(pre[:, 3 * H:4 * H])
            c[l] = f_g * c[l] + i_g * g_g
            h[l] = o_g * jnp.tanh(c[l])
            inp = h[l]
        outs.append(inp)
    out = jnp.stack(outs)                                    # (T, B, H)
    dec = (jnp.dot(out.reshape(-1, H).astype(bf), dec_w,
                   preferred_element_type=f32) + p["dec_b"]).reshape(T, B, -1)
    return dec, (jnp.stack(h), jnp.stack(c))


if __name__ == "__main__":
    # small shapes consistent with the module (feature_dim=4, emsize=nhid=32, nlayers=2)
    T, B = 8, 2
    ENC_IN, HID, DEC_OUT, NLAYERS = 4, 32, 4, 2

    key = jax.random.PRNGKey(0)
    k_x, k_p = jax.random.split(key)
    x = jax.random.normal(k_x, (T, B, ENC_IN), jnp.float32)
    params = make_params(k_p, ENC_IN, HID, DEC_OUT, NLAYERS)
    # init_hidden: zeros
    h0 = jnp.zeros((NLAYERS, B, HID), jnp.float32)
    c0 = jnp.zeros((NLAYERS, B, HID), jnp.float32)

    decoded, (h_n, c_n) = model_server_forward(x, h0, c0, params)
    jax.block_until_ready((decoded, h_n, c_n))

    ref_dec, (ref_h, ref_c) = reference_forward(x, h0, c0, params)
    assert np.allclose(np.asarray(decoded), np.asarray(ref_dec), atol=2e-3, rtol=2e-3)
    assert np.allclose(np.asarray(h_n), np.asarray(ref_h), atol=2e-3, rtol=2e-3)
    assert np.allclose(np.asarray(c_n), np.asarray(ref_c), atol=2e-3, rtol=2e-3)

    print("KERNEL_OK")
</pallas_src>

<mosaic_0001>
module attributes {stable_mosaic.version = 11 : i64} {
  func.func @_lstm_model_kernel(%arg0: i32, %arg1: memref<16x4xf32, #tpu.memory_space<vmem>>, %arg2: memref<4x32xbf16, #tpu.memory_space<vmem>>, %arg3: memref<1x32xf32, #tpu.memory_space<vmem>>, %arg4: memref<2x64x128xbf16, #tpu.memory_space<vmem>>, %arg5: memref<2x1x128xf32, #tpu.memory_space<vmem>>, %arg6: memref<2x2x32xf32, #tpu.memory_space<vmem>>, %arg7: memref<2x2x32xf32, #tpu.memory_space<vmem>>, %arg8: memref<32x128xbf16, #tpu.memory_space<vmem>>, %arg9: memref<1x128xf32, #tpu.memory_space<vmem>>, %arg10: memref<16x128xf32, #tpu.memory_space<vmem>>, %arg11: memref<2x2x32xf32, #tpu.memory_space<vmem>>, %arg12: memref<2x2x32xf32, #tpu.memory_space<vmem>>) attributes {dimension_semantics = [#tpu.dimension_semantics<arbitrary>], iteration_bounds = array<i64: 1>, scalar_prefetch = 0 : i64, scratch_operands = 0 : i64, tpu.core_type = #tpu.core_type<tc>, window_params = [{transform_indices = @transform_0, window_bounds = array<i64: 16, 4>}, {pipeline_mode = #tpu.pipeline_mode<synchronous>, transform_indices = @transform_1, window_bounds = array<i64: 4, 32>}, {pipeline_mode = #tpu.pipeline_mode<synchronous>, transform_indices = @transform_2, window_bounds = array<i64: 1, 32>}, {pipeline_mode = #tpu.pipeline_mode<synchronous>, transform_indices = @transform_3, window_bounds = array<i64: 2, 64, 128>}, {pipeline_mode = #tpu.pipeline_mode<synchronous>, transform_indices = @transform_4, window_bounds = array<i64: 2, 1, 128>}, {pipeline_mode = #tpu.pipeline_mode<synchronous>, transform_indices = @transform_5, window_bounds = array<i64: 2, 2, 32>}, {pipeline_mode = #tpu.pipeline_mode<synchronous>, transform_indices = @transform_6, window_bounds = array<i64: 2, 2, 32>}, {pipeline_mode = #tpu.pipeline_mode<synchronous>, transform_indices = @transform_7, window_bounds = array<i64: 32, 128>}, {pipeline_mode = #tpu.pipeline_mode<synchronous>, transform_indices = @transform_8, window_bounds = array<i64: 1, 128>}, {transform_indices = @transform_9, window_bounds = array<i64: 16, 128>}, {pipeline_mode = #tpu.pipeline_mode<synchronous>, transform_indices = @transform_10, window_bounds = array<i64: 2, 2, 32>}, {pipeline_mode = #tpu.pipeline_mode<synchronous>, transform_indices = @transform_11, window_bounds = array<i64: 2, 2, 32>}]} {
    %c0_i32 = arith.constant 0 : i32
    %0 = arith.cmpi eq, %arg0, %c0_i32 : i32
    %1 = arith.extui %0 : i1 to i32
    %c0_i32_0 = arith.constant 0 : i32
    %2 = arith.cmpi ne, %1, %c0_i32_0 : i32
    scf.if %2 {
      %c0_196 = arith.constant 0 : index
      %c0_197 = arith.constant 0 : index
      %c0_198 = arith.constant 0 : index
      %590 = vector.load %arg6[%c0_196, %c0_197, %c0_198] : memref<2x2x32xf32, #tpu.memory_space<vmem>>, vector<2x2x32xf32>
      %c0_199 = arith.constant 0 : index
      %c0_200 = arith.constant 0 : index
      %c0_201 = arith.constant 0 : index
      %591 = vector.load %arg11[%c0_199, %c0_200, %c0_201] : memref<2x2x32xf32, #tpu.memory_space<vmem>>, vector<2x2x32xf32>
      tpu.vector_store %arg11[%c0_199, %c0_200, %c0_201], %590 {strides = array<i32>} : memref<2x2x32xf32, #tpu.memory_space<vmem>>, vector<2x2x32xf32>,
      %c0_202 = arith.constant 0 : index
      %c0_203 = arith.constant 0 : index
      %c0_204 = arith.constant 0 : index
      %592 = vector.load %arg7[%c0_202, %c0_203, %c0_204] : memref<2x2x32xf32, #tpu.memory_space<vmem>>, vector<2x2x32xf32>
      %c0_205 = arith.constant 0 : index
      %c0_206 = arith.constant 0 : index
      %c0_207 = arith.constant 0 : index
      %593 = vector.load %arg12[%c0_205, %c0_206, %c0_207] : memref<2x2x32xf32, #tpu.memory_space<vmem>>, vector<2x2x32xf32>
      tpu.vector_store %arg12[%c0_205, %c0_206, %c0_207], %592 {strides = array<i32>} : memref<2x2x32xf32, #tpu.memory_space<vmem>>, vector<2x2x32xf32>,
    } else {
    }
    %c0 = arith.constant 0 : index
    %c0_1 = arith.constant 0 : index
    %3 = vector.load %arg1[%c0, %c0_1] : memref<16x4xf32, #tpu.memory_space<vmem>>, vector<16x4xf32>
    %4 = arith.truncf %3 : vector<16x4xf32> to vector<16x4xbf16>
    %c0_2 = arith.constant 0 : index
    %c0_3 = arith.constant 0 : index
    %5 = vector.load %arg2[%c0_2, %c0_3] : memref<4x32xbf16, #tpu.memory_space<vmem>>, vector<4x32xbf16>
    %cst = arith.constant dense<0.000000e+00> : vector<16x32xf32>
    %6 = tpu.matmul %4, %5, %cst {dimension_numbers = #tpu.dot_dimension_numbers<[1], [0], [0], [1], [0, 0, 1, 1], [], []>} : vector<16x4xbf16>, vector<4x32xbf16>, vector<16x32xf32> -> vector<16x32xf32>
    %c0_4 = arith.constant 0 : index
    %c0_5 = arith.constant 0 : index
    %7 = vector.load %arg3[%c0_4, %c0_5] : memref<1x32xf32, #tpu.memory_space<vmem>>, vector<1x32xf32>
    %8 = vector.broadcast %7 : vector<1x32xf32> to vector<16x32xf32>
    %9 = arith.addf %6, %8 : vector<16x32xf32>
    %c0_6 = arith.constant 0 : index
    %c0_7 = arith.constant 0 : index
    %c0_8 = arith.constant 0 : index
    %10 = vector.load %arg11[%c0_6, %c0_7, %c0_8] : memref<2x2x32xf32, #tpu.memory_space<vmem>>, vector<1x2x32xf32>
    %11 = vector.shape_cast %10 : vector<1x2x32xf32> to vector<2x32xf32>
    %c1 = arith.constant 1 : index
    %c0_9 = arith.constant 0 : index
    %c0_10 = arith.constant 0 : index
    %12 = vector.load %arg11[%c1, %c0_9, %c0_10] : memref<2x2x32xf32, #tpu.memory_space<vmem>>, vector<1x2x32xf32>
    %13 = vector.shape_cast %12 : vector<1x2x32xf32> to vector<2x32xf32>
    %c0_11 = arith.constant 0 : index
    %c0_12 = arith.constant 0 : index
    %c0_13 = arith.constant 0 : index
    %14 = vector.load %arg12[%c0_11, %c0_12, %c0_13] : memref<2x2x32xf32, #tpu.memory_space<vmem>>, vector<1x2x32xf32>
    %15 = vector.shape_cast %14 : vector<1x2x32xf32> to vector<2x32xf32>
    %c1_14 = arith.constant 1 : index
    %c0_15 = arith.constant 0 : index
    %c0_16 = arith.constant 0 : index
    %16 = vector.load %arg12[%c1_14, %c0_15, %c0_16] : memref<2x2x32xf32, #tpu.memory_space<vmem>>, vector<1x2x32xf32>
    %17 = vector.shape_cast %16 : vector<1x2x32xf32> to vector<2x32xf32>
    %18 = vector.extract_strided_slice %9 {offsets = [0, 0], sizes = [2, 32], strides = [1, 1]} : vector<16x32xf32> to vector<2x32xf32>
    %19 = tpu.concatenate %18, %11 in 1 : vector<2x32xf32>, vector<2x32xf32> -> vector<2x64xf32>
    %20 = arith.truncf %19 : vector<2x64xf32> to vector<2x64xbf16>
    %c0_17 = arith.constant 0 : index
    %c0_18 = arith.constant 0 : index
    %c0_19 = arith.constant 0 : index
    %21 = vector.load %arg4[%c0_17, %c0_18, %c0_19] : memref<2x64x128xbf16, #tpu.memory_space<vmem>>, vector<1x64x128xbf16>
    %22 = vector.shape_cast %21 : vector<1x64x128xbf16> to vector<64x128xbf16>
    %cst_20 = arith.constant dense<0.000000e+00> : vector<2x128xf32>
    %23 = tpu.matmul %20, %22, %cst_20 {dimension_numbers = #tpu.dot_dimension_numbers<[1], [0], [0], [1], [0, 0, 1, 1], [], []>} : vector<2x64xbf16>, vector<64x128xbf16>, vector<2x128xf32> -> vector<2x128xf32>
    %c0_21 = arith.constant 0 : index
    %c0_22 = arith.constant 0 : index
    %c0_23 = arith.constant 0 : index
    %24 = vector.load %arg5[%c0_21, %c0_22, %c0_23] : memref<2x1x128xf32, #tpu.memory_space<vmem>>, vector<1x1x128xf32>
    %25 = vector.shape_cast %24 : vector<1x1x128xf32> to vector<1x128xf32>
    %26 = vector.broadcast %25 : vector<1x128xf32> to vector<2x128xf32>
    %27 = arith.addf %23, %26 : vector<2x128xf32>
    %28 = vector.extract_strided_slice %27 {offsets = [0, 0], sizes = [2, 32], strides = [1, 1]} : vector<2x128xf32> to vector<2x32xf32>
    %29 = arith.negf %28 : vector<2x32xf32>
    %30 = math.exp %29 : vector<2x32xf32>
    %cst_24 = arith.constant 1.000000e+00 : f32
    %31 = vector.broadcast %cst_24 : f32 to vector<2x32xf32>
    %32 = arith.addf %31, %30 : vector<2x32xf32>
    %33 = arith.divf %31, %32 : vector<2x32xf32>
    %34 = vector.extract_strided_slice %27 {offsets = [0, 32], sizes = [2, 32], strides = [1, 1]} : vector<2x128xf32> to vector<2x32xf32>
    %35 = arith.negf %34 : vector<2x32xf32>
    %36 = math.exp %35 : vector<2x32xf32>
    %cst_25 = arith.constant 1.000000e+00 : f32
    %37 = vector.broadcast %cst_25 : f32 to vector<2x32xf32>
    %38 = arith.addf %37, %36 : vector<2x32xf32>
    %39 = arith.divf %37, %38 : vector<2x32xf32>
    %40 = vector.extract_strided_slice %27 {offsets = [0, 64], sizes = [2, 32], strides = [1, 1]} : vector<2x128xf32> to vector<2x32xf32>
    %41 = math.tanh %40 : vector<2x32xf32>
    %42 = vector.extract_strided_slice %27 {offsets = [0, 96], sizes = [2, 32], strides = [1, 1]} : vector<2x128xf32> to vector<2x32xf32>
    %43 = arith.negf %42 : vector<2x32xf32>
    %44 = math.exp %43 : vector<2x32xf32>
    %cst_26 = arith.constant 1.000000e+00 : f32
    %45 = vector.broadcast %cst_26 : f32 to vector<2x32xf32>
    %46 = arith.addf %45, %44 : vector<2x32xf32>
    %47 = arith.divf %45, %46 : vector<2x32xf32>
    %48 = arith.mulf %39, %15 : vector<2x32xf32>
    %49 = arith.mulf %33, %41 : vector<2x32xf32>
    %50 = arith.addf %48, %49 : vector<2x32xf32>
    %51 = math.tanh %50 : vector<2x32xf32>
    %52 = arith.mulf %47, %51 : vector<2x32xf32>
    %53 = tpu.concatenate %52, %13 in 1 : vector<2x32xf32>, vector<2x32xf32> -> vector<2x64xf32>
    %54 = arith.truncf %53 : vector<2x64xf32> to vector<2x64xbf16>
    %c1_27 = arith.constant 1 : index
    %c0_28 = arith.constant 0 : index
    %c0_29 = arith.constant 0 : index
    %55 = vector.load %arg4[%c1_27, %c0_28, %c0_29] : memref<2x64x128xbf16, #tpu.memory_space<vmem>>, vector<1x64x128xbf16>
    %56 = vector.shape_cast %55 : vector<1x64x128xbf16> to vector<64x128xbf16>
    %cst_30 = arith.constant dense<0.000000e+00> : vector<2x128xf32>
    %57 = tpu.matmul %54, %56, %cst_30 {dimension_numbers = #tpu.dot_dimension_numbers<[1], [0], [0], [1], [0, 0, 1, 1], [], []>} : vector<2x64xbf16>, vector<64x128xbf16>, vector<2x128xf32> -> vector<2x128xf32>
    %c1_31 = arith.constant 1 : index
    %c0_32 = arith.constant 0 : index
    %c0_33 = arith.constant 0 : index
    %58 = vector.load %arg5[%c1_31, %c0_32, %c0_33] : memref<2x1x128xf32, #tpu.memory_space<vmem>>, vector<1x1x128xf32>
    %59 = vector.shape_cast %58 : vector<1x1x128xf32> to vector<1x128xf32>
    %60 = vector.broadcast %59 : vector<1x128xf32> to vector<2x128xf32>
    %61 = arith.addf %57, %60 : vector<2x128xf32>
    %62 = vector.extract_strided_slice %61 {offsets = [0, 0], sizes = [2, 32], strides = [1, 1]} : vector<2x128xf32> to vector<2x32xf32>
    %63 = arith.negf %62 : vector<2x32xf32>
    %64 = math.exp %63 : vector<2x32xf32>
    %cst_34 = arith.constant 1.000000e+00 : f32
    %65 = vector.broadcast %cst_34 : f32 to vector<2x32xf32>
    %66 = arith.addf %65, %64 : vector<2x32xf32>
    %67 = arith.divf %65, %66 : vector<2x32xf32>
    %68 = vector.extract_strided_slice %61 {offsets = [0, 32], sizes = [2, 32], strides = [1, 1]} : vector<2x128xf32> to vector<2x32xf32>
    %69 = arith.negf %68 : vector<2x32xf32>
    %70 = math.exp %69 : vector<2x32xf32>
    %cst_35 = arith.constant 1.000000e+00 : f32
    %71 = vector.broadcast %cst_35 : f32 to vector<2x32xf32>
    %72 = arith.addf %71, %70 : vector<2x32xf32>
    %73 = arith.divf %71, %72 : vector<2x32xf32>
    %74 = vector.extract_strided_slice %61 {offsets = [0, 64], sizes = [2, 32], strides = [1, 1]} : vector<2x128xf32> to vector<2x32xf32>
    %75 = math.tanh %74 : vector<2x32xf32>
    %76 = vector.extract_strided_slice %61 {offsets = [0, 96], sizes = [2, 32], strides = [1, 1]} : vector<2x128xf32> to vector<2x32xf32>
    %77 = arith.negf %76 : vector<2x32xf32>
    %78 = math.exp %77 : vector<2x32xf32>
    %cst_36 = arith.constant 1.000000e+00 : f32
    %79 = vector.broadcast %cst_36 : f32 to vector<2x32xf32>
    %80 = arith.addf %79, %78 : vector<2x32xf32>
    %81 = arith.divf %79, %80 : vector<2x32xf32>
    %82 = arith.mulf %73, %17 : vector<2x32xf32>
    %83 = arith.mulf %67, %75 : vector<2x32xf32>
    %84 = arith.addf %82, %83 : vector<2x32xf32>
    %85 = math.tanh %84 : vector<2x32xf32>
    %86 = arith.mulf %81, %85 : vector<2x32xf32>
    %87 = vector.extract_strided_slice %9 {offsets = [2, 0], sizes = [2, 32], strides = [1, 1]} : vector<16x32xf32> to vector<2x32xf32>
    %88 = tpu.concatenate %87, %52 in 1 : vector<2x32xf32>, vector<2x32xf32> -> vector<2x64xf32>
    %89 = arith.truncf %88 : vector<2x64xf32> to vector<2x64xbf16>
    %c0_37 = arith.constant 0 : index
    %c0_38 = arith.constant 0 : index
    %c0_39 = arith.constant 0 : index
    %90 = vector.load %arg4[%c0_37, %c0_38, %c0_39] : memref<2x64x128xbf16, #tpu.memory_space<vmem>>, vector<1x64x128xbf16>
    %91 = vector.shape_cast %90 : vector<1x64x128xbf16> to vector<64x128xbf16>
    %cst_40 = arith.constant dense<0.000000e+00> : vector<2x128xf32>
    %92 = tpu.matmul %89, %91, %cst_40 {dimension_numbers = #tpu.dot_dimension_numbers<[1], [0], [0], [1], [0, 0, 1, 1], [], []>} : vector<2x64xbf16>, vector<64x128xbf16>, vector<2x128xf32> -> vector<2x128xf32>
    %c0_41 = arith.constant 0 : index
    %c0_42 = arith.constant 0 : index
    %c0_43 = arith.constant 0 : index
    %93 = vector.load %arg5[%c0_41, %c0_42, %c0_43] : memref<2x1x128xf32, #tpu.memory_space<vmem>>, vector<1x1x128xf32>
    %94 = vector.shape_cast %93 : vector<1x1x128xf32> to vector<1x128xf32>
    %95 = vector.broadcast %94 : vector<1x128xf32> to vector<2x128xf32>
    %96 = arith.addf %92, %95 : vector<2x128xf32>
    %97 = vector.extract_strided_slice %96 {offsets = [0, 0], sizes = [2, 32], strides = [1, 1]} : vector<2x128xf32> to vector<2x32xf32>
    %98 = arith.negf %97 : vector<2x32xf32>
    %99 = math.exp %98 : vector<2x32xf32>
    %cst_44 = arith.constant 1.000000e+00 : f32
    %100 = vector.broadcast %cst_44 : f32 to vector<2x32xf32>
    %101 = arith.addf %100, %99 : vector<2x32xf32>
    %102 = arith.divf %100, %101 : vector<2x32xf32>
    %103 = vector.extract_strided_slice %96 {offsets = [0, 32], sizes = [2, 32], strides = [1, 1]} : vector<2x128xf32> to vector<2x32xf32>
    %104 = arith.negf %103 : vector<2x32xf32>
    %105 = math.exp %104 : vector<2x32xf32>
    %cst_45 = arith.constant 1.000000e+00 : f32
    %106 = vector.broadcast %cst_45 : f32 to vector<2x32xf32>
    %107 = arith.addf %106, %105 : vector<2x32xf32>
    %108 = arith.divf %106, %107 : vector<2x32xf32>
    %109 = vector.extract_strided_slice %96 {offsets = [0, 64], sizes = [2, 32], strides = [1, 1]} : vector<2x128xf32> to vector<2x32xf32>
    %110 = math.tanh %109 : vector<2x32xf32>
    %111 = vector.extract_strided_slice %96 {offsets = [0, 96], sizes = [2, 32], strides = [1, 1]} : vector<2x128xf32> to vector<2x32xf32>
    %112 = arith.negf %111 : vector<2x32xf32>
    %113 = math.exp %112 : vector<2x32xf32>
    %cst_46 = arith.constant 1.000000e+00 : f32
    %114 = vector.broadcast %cst_46 : f32 to vector<2x32xf32>
    %115 = arith.addf %114, %113 : vector<2x32xf32>
    %116 = arith.divf %114, %115 : vector<2x32xf32>
    %117 = arith.mulf %108, %50 : vector<2x32xf32>
    %118 = arith.mulf %102, %110 : vector<2x32xf32>
    %119 = arith.addf %117, %118 : vector<2x32xf32>
    %120 = math.tanh %119 : vector<2x32xf32>
    %121 = arith.mulf %116, %120 : vector<2x32xf32>
    %122 = tpu.concatenate %121, %86 in 1 : vector<2x32xf32>, vector<2x32xf32> -> vector<2x64xf32>
    %123 = arith.truncf %122 : vector<2x64xf32> to vector<2x64xbf16>
    %c1_47 = arith.constant 1 : index
    %c0_48 = arith.constant 0 : index
    %c0_49 = arith.constant 0 : index
    %124 = vector.load %arg4[%c1_47, %c0_48, %c0_49] : memref<2x64x128xbf16, #tpu.memory_space<vmem>>, vector<1x64x128xbf16>
    %125 = vector.shape_cast %124 : vector<1x64x128xbf16> to vector<64x128xbf16>
    %cst_50 = arith.constant dense<0.000000e+00> : vector<2x128xf32>
    %126 = tpu.matmul %123, %125, %cst_50 {dimension_numbers = #tpu.dot_dimension_numbers<[1], [0], [0], [1], [0, 0, 1, 1], [], []>} : vector<2x64xbf16>, vector<64x128xbf16>, vector<2x128xf32> -> vector<2x128xf32>
    %c1_51 = arith.constant 1 : index
    %c0_52 = arith.constant 0 : index
    %c0_53 = arith.constant 0 : index
    %127 = vector.load %arg5[%c1_51, %c0_52, %c0_53] : memref<2x1x128xf32, #tpu.memory_space<vmem>>, vector<1x1x128xf32>
    %128 = vector.shape_cast %127 : vector<1x1x128xf32> to vector<1x128xf32>
    %129 = vector.broadcast %128 : vector<1x128xf32> to vector<2x128xf32>
    %130 = arith.addf %126, %129 : vector<2x128xf32>
    %131 = vector.extract_strided_slice %130 {offsets = [0, 0], sizes = [2, 32], strides = [1, 1]} : vector<2x128xf32> to vector<2x32xf32>
    %132 = arith.negf %131 : vector<2x32xf32>
    %133 = math.exp %132 : vector<2x32xf32>
    %cst_54 = arith.constant 1.000000e+00 : f32
    %134 = vector.broadcast %cst_54 : f32 to vector<2x32xf32>
    %135 = arith.addf %134, %133 : vector<2x32xf32>
    %136 = arith.divf %134, %135 : vector<2x32xf32>
    %137 = vector.extract_strided_slice %130 {offsets = [0, 32], sizes = [2, 32], strides = [1, 1]} : vector<2x128xf32> to vector<2x32xf32>
    %138 = arith.negf %137 : vector<2x32xf32>
    %139 = math.exp %138 : vector<2x32xf32>
    %cst_55 = arith.constant 1.000000e+00 : f32
    %140 = vector.broadcast %cst_55 : f32 to vector<2x32xf32>
    %141 = arith.addf %140, %139 : vector<2x32xf32>
    %142 = arith.divf %140, %141 : vector<2x32xf32>
    %143 = vector.extract_strided_slice %130 {offsets = [0, 64], sizes = [2, 32], strides = [1, 1]} : vector<2x128xf32> to vector<2x32xf32>
    %144 = math.tanh %143 : vector<2x32xf32>
    %145 = vector.extract_strided_slice %130 {offsets = [0, 96], sizes = [2, 32], strides = [1, 1]} : vector<2x128xf32> to vector<2x32xf32>
    %146 = arith.negf %145 : vector<2x32xf32>
    %147 = math.exp %146 : vector<2x32xf32>
    %cst_56 = arith.constant 1.000000e+00 : f32
    %148 = vector.broadcast %cst_56 : f32 to vector<2x32xf32>
    %149 = arith.addf %148, %147 : vector<2x32xf32>
    %150 = arith.divf %148, %149 : vector<2x32xf32>
    %151 = arith.mulf %142, %84 : vector<2x32xf32>
    %152 = arith.mulf %136, %144 : vector<2x32xf32>
    %153 = arith.addf %151, %152 : vector<2x32xf32>
    %154 = math.tanh %153 : vector<2x32xf32>
    %155 = arith.mulf %150, %154 : vector<2x32xf32>
    %156 = vector.extract_strided_slice %9 {offsets = [4, 0], sizes = [2, 32], strides = [1, 1]} : vector<16x32xf32> to vector<2x32xf32>
    %157 = tpu.concatenate %156, %121 in 1 : vector<2x32xf32>, vector<2x32xf32> -> vector<2x64xf32>
    %158 = arith.truncf %157 : vector<2x64xf32> to vector<2x64xbf16>
    %c0_57 = arith.constant 0 : index
    %c0_58 = arith.constant 0 : index
    %c0_59 = arith.constant 0 : index
    %159 = vector.load %arg4[%c0_57, %c0_58, %c0_59] : memref<2x64x128xbf16, #tpu.memory_space<vmem>>, vector<1x64x128xbf16>
    %160 = vector.shape_cast %159 : vector<1x64x128xbf16> to vector<64x128xbf16>
    %cst_60 = arith.constant dense<0.000000e+00> : vector<2x128xf32>
    %161 = tpu.matmul %158, %160, %cst_60 {dimension_numbers = #tpu.dot_dimension_numbers<[1], [0], [0], [1], [0, 0, 1, 1], [], []>} : vector<2x64xbf16>, vector<64x128xbf16>, vector<2x128xf32> -> vector<2x128xf32>
    %c0_61 = arith.constant 0 : index
    %c0_62 = arith.constant 0 : index
    %c0_63 = arith.constant 0 : index
    %162 = vector.load %arg5[%c0_61, %c0_62, %c0_63] : memref<2x1x128xf32, #tpu.memory_space<vmem>>, vector<1x1x128xf32>
    %163 = vector.shape_cast %162 : vector<1x1x128xf32> to vector<1x128xf32>
    %164 = vector.broadcast %163 : vector<1x128xf32> to vector<2x128xf32>
    %165 = arith.addf %161, %164 : vector<2x128xf32>
    %166 = vector.extract_strided_slice %165 {offsets = [0, 0], sizes = [2, 32], strides = [1, 1]} : vector<2x128xf32> to vector<2x32xf32>
    %167 = arith.negf %166 : vector<2x32xf32>
    %168 = math.exp %167 : vector<2x32xf32>
    %cst_64 = arith.constant 1.000000e+00 : f32
    %169 = vector.broadcast %cst_64 : f32 to vector<2x32xf32>
    %170 = arith.addf %169, %168 : vector<2x32xf32>
    %171 = arith.divf %169, %170 : vector<2x32xf32>
    %172 = vector.extract_strided_slice %165 {offsets = [0, 32], sizes = [2, 32], strides = [1, 1]} : vector<2x128xf32> to vector<2x32xf32>
    %173 = arith.negf %172 : vector<2x32xf32>
    %174 = math.exp %173 : vector<2x32xf32>
    %cst_65 = arith.constant 1.000000e+00 : f32
    %175 = vector.broadcast %cst_65 : f32 to vector<2x32xf32>
    %176 = arith.addf %175, %174 : vector<2x32xf32>
    %177 = arith.divf %175, %176 : vector<2x32xf32>
    %178 = vector.extract_strided_slice %165 {offsets = [0, 64], sizes = [2, 32], strides = [1, 1]} : vector<2x128xf32> to vector<2x32xf32>
    %179 = math.tanh %178 : vector<2x32xf32>
    %180 = vector.extract_strided_slice %165 {offsets = [0, 96], sizes = [2, 32], strides = [1, 1]} : vector<2x128xf32> to vector<2x32xf32>
    %181 = arith.negf %180 : vector<2x32xf32>
    %182 = math.exp %181 : vector<2x32xf32>
    %cst_66 = arith.constant 1.000000e+00 : f32
    %183 = vector.broadcast %cst_66 : f32 to vector<2x32xf32>
    %184 = arith.addf %183, %182 : vector<2x32xf32>
    %185 = arith.divf %183, %184 : vector<2x32xf32>
    %186 = arith.mulf %177, %119 : vector<2x32xf32>
    %187 = arith.mulf %171, %179 : vector<2x32xf32>
    %188 = arith.addf %186, %187 : vector<2x32xf32>
    %189 = math.tanh %188 : vector<2x32xf32>
    %190 = arith.mulf %185, %189 : vector<2x32xf32>
    %191 = tpu.concatenate %190, %155 in 1 : vector<2x32xf32>, vector<2x32xf32> -> vector<2x64xf32>
    %192 = arith.truncf %191 : vector<2x64xf32> to vector<2x64xbf16>
    %c1_67 = arith.constant 1 : index
    %c0_68 = arith.constant 0 : index
    %c0_69 = arith.constant 0 : index
    %193 = vector.load %arg4[%c1_67, %c0_68, %c0_69] : memref<2x64x128xbf16, #tpu.memory_space<vmem>>, vector<1x64x128xbf16>
    %194 = vector.shape_cast %193 : vector<1x64x128xbf16> to vector<64x128xbf16>
    %cst_70 = arith.constant dense<0.000000e+00> : vector<2x128xf32>
    %195 = tpu.matmul %192, %194, %cst_70 {dimension_numbers = #tpu.dot_dimension_numbers<[1], [0], [0], [1], [0, 0, 1, 1], [], []>} : vector<2x64xbf16>, vector<64x128xbf16>, vector<2x128xf32> -> vector<2x128xf32>
    %c1_71 = arith.constant 1 : index
    %c0_72 = arith.constant 0 : index
    %c0_73 = arith.constant 0 : index
    %196 = vector.load %arg5[%c1_71, %c0_72, %c0_73] : memref<2x1x128xf32, #tpu.memory_space<vmem>>, vector<1x1x128xf32>
    %197 = vector.shape_cast %196 : vector<1x1x128xf32> to vector<1x128xf32>
    %198 = vector.broadcast %197 : vector<1x128xf32> to vector<2x128xf32>
    %199 = arith.addf %195, %198 : vector<2x128xf32>
    %200 = vector.extract_strided_slice %199 {offsets = [0, 0], sizes = [2, 32], strides = [1, 1]} : vector<2x128xf32> to vector<2x32xf32>
    %201 = arith.negf %200 : vector<2x32xf32>
    %202 = math.exp %201 : vector<2x32xf32>
    %cst_74 = arith.constant 1.000000e+00 : f32
    %203 = vector.broadcast %cst_74 : f32 to vector<2x32xf32>
    %204 = arith.addf %203, %202 : vector<2x32xf32>
    %205 = arith.divf %203, %204 : vector<2x32xf32>
    %206 = vector.extract_strided_slice %199 {offsets = [0, 32], sizes = [2, 32], strides = [1, 1]} : vector<2x128xf32> to vector<2x32xf32>
    %207 = arith.negf %206 : vector<2x32xf32>
    %208 = math.exp %207 : vector<2x32xf32>
    %cst_75 = arith.constant 1.000000e+00 : f32
    %209 = vector.broadcast %cst_75 : f32 to vector<2x32xf32>
    %210 = arith.addf %209, %208 : vector<2x32xf32>
    %211 = arith.divf %209, %210 : vector<2x32xf32>
    %212 = vector.extract_strided_slice %199 {offsets = [0, 64], sizes = [2, 32], strides = [1, 1]} : vector<2x128xf32> to vector<2x32xf32>
    %213 = math.tanh %212 : vector<2x32xf32>
    %214 = vector.extract_strided_slice %199 {offsets = [0, 96], sizes = [2, 32], strides = [1, 1]} : vector<2x128xf32> to vector<2x32xf32>
    %215 = arith.negf %214 : vector<2x32xf32>
    %216 = math.exp %215 : vector<2x32xf32>
    %cst_76 = arith.constant 1.000000e+00 : f32
    %217 = vector.broadcast %cst_76 : f32 to vector<2x32xf32>
    %218 = arith.addf %217, %216 : vector<2x32xf32>
    %219 = arith.divf %217, %218 : vector<2x32xf32>
    %220 = arith.mulf %211, %153 : vector<2x32xf32>
    %221 = arith.mulf %205, %213 : vector<2x32xf32>
    %222 = arith.addf %220, %221 : vector<2x32xf32>
    %223 = math.tanh %222 : vector<2x32xf32>
    %224 = arith.mulf %219, %223 : vector<2x32xf32>
    %225 = vector.extract_strided_slice %9 {offsets = [6, 0], sizes = [2, 32], strides = [1, 1]} : vector<16x32xf32> to vector<2x32xf32>
    %226 = tpu.concatenate %225, %190 in 1 : vector<2x32xf32>, vector<2x32xf32> -> vector<2x64xf32>
    %227 = arith.truncf %226 : vector<2x64xf32> to vector<2x64xbf16>
    %c0_77 = arith.constant 0 : index
    %c0_78 = arith.constant 0 : index
    %c0_79 = arith.constant 0 : index
    %228 = vector.load %arg4[%c0_77, %c0_78, %c0_79] : memref<2x64x128xbf16, #tpu.memory_space<vmem>>, vector<1x64x128xbf16>
    %229 = vector.shape_cast %228 : vector<1x64x128xbf16> to vector<64x128xbf16>
    %cst_80 = arith.constant dense<0.000000e+00> : vector<2x128xf32>
    %230 = tpu.matmul %227, %229, %cst_80 {dimension_numbers = #tpu.dot_dimension_numbers<[1], [0], [0], [1], [0, 0, 1, 1], [], []>} : vector<2x64xbf16>, vector<64x128xbf16>, vector<2x128xf32> -> vector<2x128xf32>
    %c0_81 = arith.constant 0 : index
    %c0_82 = arith.constant 0 : index
    %c0_83 = arith.constant 0 : index
    %231 = vector.load %arg5[%c0_81, %c0_82, %c0_83] : memref<2x1x128xf32, #tpu.memory_space<vmem>>, vector<1x1x128xf32>
    %232 = vector.shape_cast %231 : vector<1x1x128xf32> to vector<1x128xf32>
    %233 = vector.broadcast %232 : vector<1x128xf32> to vector<2x128xf32>
    %234 = arith.addf %230, %233 : vector<2x128xf32>
    %235 = vector.extract_strided_slice %234 {offsets = [0, 0], sizes = [2, 32], strides = [1, 1]} : vector<2x128xf32> to vector<2x32xf32>
    %236 = arith.negf %235 : vector<2x32xf32>
    %237 = math.exp %236 : vector<2x32xf32>
    %cst_84 = arith.constant 1.000000e+00 : f32
    %238 = vector.broadcast %cst_84 : f32 to vector<2x32xf32>
    %239 = arith.addf %238, %237 : vector<2x32xf32>
    %240 = arith.divf %238, %239 : vector<2x32xf32>
    %241 = vector.extract_strided_slice %234 {offsets = [0, 32], sizes = [2, 32], strides = [1, 1]} : vector<2x128xf32> to vector<2x32xf32>
    %242 = arith.negf %241 : vector<2x32xf32>
    %243 = math.exp %242 : vector<2x32xf32>
    %cst_85 = arith.constant 1.000000e+00 : f32
    %244 = vector.broadcast %cst_85 : f32 to vector<2x32xf32>
    %245 = arith.addf %244, %243 : vector<2x32xf32>
    %246 = arith.divf %244, %245 : vector<2x32xf32>
    %247 = vector.extract_strided_slice %234 {offsets = [0, 64], sizes = [2, 32], strides = [1, 1]} : vector<2x128xf32> to vector<2x32xf32>
    %248 = math.tanh %247 : vector<2x32xf32>
    %249 = vector.extract_strided_slice %234 {offsets = [0, 96], sizes = [2, 32], strides = [1, 1]} : vector<2x128xf32> to vector<2x32xf32>
    %250 = arith.negf %249 : vector<2x32xf32>
    %251 = math.exp %250 : vector<2x32xf32>
    %cst_86 = arith.constant 1.000000e+00 : f32
    %252 = vector.broadcast %cst_86 : f32 to vector<2x32xf32>
    %253 = arith.addf %252, %251 : vector<2x32xf32>
    %254 = arith.divf %252, %253 : vector<2x32xf32>
    %255 = arith.mulf %246, %188 : vector<2x32xf32>
    %256 = arith.mulf %240, %248 : vector<2x32xf32>
    %257 = arith.addf %255, %256 : vector<2x32xf32>
    %258 = math.tanh %257 : vector<2x32xf32>
    %259 = arith.mulf %254, %258 : vector<2x32xf32>
    %260 = tpu.concatenate %259, %224 in 1 : vector<2x32xf32>, vector<2x32xf32> -> vector<2x64xf32>
    %261 = arith.truncf %260 : vector<2x64xf32> to vector<2x64xbf16>
    %c1_87 = arith.constant 1 : index
    %c0_88 = arith.constant 0 : index
    %c0_89 = arith.constant 0 : index
    %262 = vector.load %arg4[%c1_87, %c0_88, %c0_89] : memref<2x64x128xbf16, #tpu.memory_space<vmem>>, vector<1x64x128xbf16>
    %263 = vector.shape_cast %262 : vector<1x64x128xbf16> to vector<64x128xbf16>
    %cst_90 = arith.constant dense<0.000000e+00> : vector<2x128xf32>
    %264 = tpu.matmul %261, %263, %cst_90 {dimension_numbers = #tpu.dot_dimension_numbers<[1], [0], [0], [1], [0, 0, 1, 1], [], []>} : vector<2x64xbf16>, vector<64x128xbf16>, vector<2x128xf32> -> vector<2x128xf32>
    %c1_91 = arith.constant 1 : index
    %c0_92 = arith.constant 0 : index
    %c0_93 = arith.constant 0 : index
    %265 = vector.load %arg5[%c1_91, %c0_92, %c0_93] : memref<2x1x128xf32, #tpu.memory_space<vmem>>, vector<1x1x128xf32>
    %266 = vector.shape_cast %265 : vector<1x1x128xf32> to vector<1x128xf32>
    %267 = vector.broadcast %266 : vector<1x128xf32> to vector<2x128xf32>
    %268 = arith.addf %264, %267 : vector<2x128xf32>
    %269 = vector.extract_strided_slice %268 {offsets = [0, 0], sizes = [2, 32], strides = [1, 1]} : vector<2x128xf32> to vector<2x32xf32>
    %270 = arith.negf %269 : vector<2x32xf32>
    %271 = math.exp %270 : vector<2x32xf32>
    %cst_94 = arith.constant 1.000000e+00 : f32
    %272 = vector.broadcast %cst_94 : f32 to vector<2x32xf32>
    %273 = arith.addf %272, %271 : vector<2x32xf32>
    %274 = arith.divf %272, %273 : vector<2x32xf32>
    %275 = vector.extract_strided_slice %268 {offsets = [0, 32], sizes = [2, 32], strides = [1, 1]} : vector<2x128xf32> to vector<2x32xf32>
    %276 = arith.negf %275 : vector<2x32xf32>
    %277 = math.exp %276 : vector<2x32xf32>
    %cst_95 = arith.constant 1.000000e+00 : f32
    %278 = vector.broadcast %cst_95 : f32 to vector<2x32xf32>
    %279 = arith.addf %278, %277 : vector<2x32xf32>
    %280 = arith.divf %278, %279 : vector<2x32xf32>
    %281 = vector.extract_strided_slice %268 {offsets = [0, 64], sizes = [2, 32], strides = [1, 1]} : vector<2x128xf32> to vector<2x32xf32>
    %282 = math.tanh %281 : vector<2x32xf32>
    %283 = vector.extract_strided_slice %268 {offsets = [0, 96], sizes = [2, 32], strides = [1, 1]} : vector<2x128xf32> to vector<2x32xf32>
    %284 = arith.negf %283 : vector<2x32xf32>
    %285 = math.exp %284 : vector<2x32xf32>
    %cst_96 = arith.constant 1.000000e+00 : f32
    %286 = vector.broadcast %cst_96 : f32 to vector<2x32xf32>
    %287 = arith.addf %286, %285 : vector<2x32xf32>
    %288 = arith.divf %286, %287 : vector<2x32xf32>
    %289 = arith.mulf %280, %222 : vector<2x32xf32>
    %290 = arith.mulf %274, %282 : vector<2x32xf32>
    %291 = arith.addf %289, %290 : vector<2x32xf32>
    %292 = math.tanh %291 : vector<2x32xf32>
    %293 = arith.mulf %288, %292 : vector<2x32xf32>
    %294 = vector.extract_strided_slice %9 {offsets = [8, 0], sizes = [2, 32], strides = [1, 1]} : vector<16x32xf32> to vector<2x32xf32>
    %295 = tpu.concatenate %294, %259 in 1 : vector<2x32xf32>, vector<2x32xf32> -> vector<2x64xf32>
    %296 = arith.truncf %295 : vector<2x64xf32> to vector<2x64xbf16>
    %c0_97 = arith.constant 0 : index
    %c0_98 = arith.constant 0 : index
    %c0_99 = arith.constant 0 : index
    %297 = vector.load %arg4[%c0_97, %c0_98, %c0_99] : memref<2x64x128xbf16, #tpu.memory_space<vmem>>, vector<1x64x128xbf16>
    %298 = vector.shape_cast %297 : vector<1x64x128xbf16> to vector<64x128xbf16>
    %cst_100 = arith.constant dense<0.000000e+00> : vector<2x128xf32>
    %299 = tpu.matmul %296, %298, %cst_100 {dimension_numbers = #tpu.dot_dimension_numbers<[1], [0], [0], [1], [0, 0, 1, 1], [], []>} : vector<2x64xbf16>, vector<64x128xbf16>, vector<2x128xf32> -> vector<2x128xf32>
    %c0_101 = arith.constant 0 : index
    %c0_102 = arith.constant 0 : index
    %c0_103 = arith.constant 0 : index
    %300 = vector.load %arg5[%c0_101, %c0_102, %c0_103] : memref<2x1x128xf32, #tpu.memory_space<vmem>>, vector<1x1x128xf32>
    %301 = vector.shape_cast %300 : vector<1x1x128xf32> to vector<1x128xf32>
    %302 = vector.broadcast %301 : vector<1x128xf32> to vector<2x128xf32>
    %303 = arith.addf %299, %302 : vector<2x128xf32>
    %304 = vector.extract_strided_slice %303 {offsets = [0, 0], sizes = [2, 32], strides = [1, 1]} : vector<2x128xf32> to vector<2x32xf32>
    %305 = arith.negf %304 : vector<2x32xf32>
    %306 = math.exp %305 : vector<2x32xf32>
    %cst_104 = arith.constant 1.000000e+00 : f32
    %307 = vector.broadcast %cst_104 : f32 to vector<2x32xf32>
    %308 = arith.addf %307, %306 : vector<2x32xf32>
    %309 = arith.divf %307, %308 : vector<2x32xf32>
    %310 = vector.extract_strided_slice %303 {offsets = [0, 32], sizes = [2, 32], strides = [1, 1]} : vector<2x128xf32> to vector<2x32xf32>
    %311 = arith.negf %310 : vector<2x32xf32>
    %312 = math.exp %311 : vector<2x32xf32>
    %cst_105 = arith.constant 1.000000e+00 : f32
    %313 = vector.broadcast %cst_105 : f32 to vector<2x32xf32>
    %314 = arith.addf %313, %312 : vector<2x32xf32>
    %315 = arith.divf %313, %314 : vector<2x32xf32>
    %316 = vector.extract_strided_slice %303 {offsets = [0, 64], sizes = [2, 32], strides = [1, 1]} : vector<2x128xf32> to vector<2x32xf32>
    %317 = math.tanh %316 : vector<2x32xf32>
    %318 = vector.extract_strided_slice %303 {offsets = [0, 96], sizes = [2, 32], strides = [1, 1]} : vector<2x128xf32> to vector<2x32xf32>
    %319 = arith.negf %318 : vector<2x32xf32>
    %320 = math.exp %319 : vector<2x32xf32>
    %cst_106 = arith.constant 1.000000e+00 : f32
    %321 = vector.broadcast %cst_106 : f32 to vector<2x32xf32>
    %322 = arith.addf %321, %320 : vector<2x32xf32>
    %323 = arith.divf %321, %322 : vector<2x32xf32>
    %324 = arith.mulf %315, %257 : vector<2x32xf32>
    %325 = arith.mulf %309, %317 : vector<2x32xf32>
    %326 = arith.addf %324, %325 : vector<2x32xf32>
    %327 = math.tanh %326 : vector<2x32xf32>
    %328 = arith.mulf %323, %327 : vector<2x32xf32>
    %329 = tpu.concatenate %328, %293 in 1 : vector<2x32xf32>, vector<2x32xf32> -> vector<2x64xf32>
    %330 = arith.truncf %329 : vector<2x64xf32> to vector<2x64xbf16>
    %c1_107 = arith.constant 1 : index
    %c0_108 = arith.constant 0 : index
    %c0_109 = arith.constant 0 : index
    %331 = vector.load %arg4[%c1_107, %c0_108, %c0_109] : memref<2x64x128xbf16, #tpu.memory_space<vmem>>, vector<1x64x128xbf16>
    %332 = vector.shape_cast %331 : vector<1x64x128xbf16> to vector<64x128xbf16>
    %cst_110 = arith.constant dense<0.000000e+00> : vector<2x128xf32>
    %333 = tpu.matmul %330, %332, %cst_110 {dimension_numbers = #tpu.dot_dimension_numbers<[1], [0], [0], [1], [0, 0, 1, 1], [], []>} : vector<2x64xbf16>, vector<64x128xbf16>, vector<2x128xf32> -> vector<2x128xf32>
    %c1_111 = arith.constant 1 : index
    %c0_112 = arith.constant 0 : index
    %c0_113 = arith.constant 0 : index
    %334 = vector.load %arg5[%c1_111, %c0_112, %c0_113] : memref<2x1x128xf32, #tpu.memory_space<vmem>>, vector<1x1x128xf32>
    %335 = vector.shape_cast %334 : vector<1x1x128xf32> to vector<1x128xf32>
    %336 = vector.broadcast %335 : vector<1x128xf32> to vector<2x128xf32>
    %337 = arith.addf %333, %336 : vector<2x128xf32>
    %338 = vector.extract_strided_slice %337 {offsets = [0, 0], sizes = [2, 32], strides = [1, 1]} : vector<2x128xf32> to vector<2x32xf32>
    %339 = arith.negf %338 : vector<2x32xf32>
    %340 = math.exp %339 : vector<2x32xf32>
    %cst_114 = arith.constant 1.000000e+00 : f32
    %341 = vector.broadcast %cst_114 : f32 to vector<2x32xf32>
    %342 = arith.addf %341, %340 : vector<2x32xf32>
    %343 = arith.divf %341, %342 : vector<2x32xf32>
    %344 = vector.extract_strided_slice %337 {offsets = [0, 32], sizes = [2, 32], strides = [1, 1]} : vector<2x128xf32> to vector<2x32xf32>
    %345 = arith.negf %344 : vector<2x32xf32>
    %346 = math.exp %345 : vector<2x32xf32>
    %cst_115 = arith.constant 1.000000e+00 : f32
    %347 = vector.broadcast %cst_115 : f32 to vector<2x32xf32>
    %348 = arith.addf %347, %346 : vector<2x32xf32>
    %349 = arith.divf %347, %348 : vector<2x32xf32>
    %350 = vector.extract_strided_slice %337 {offsets = [0, 64], sizes = [2, 32], strides = [1, 1]} : vector<2x128xf32> to vector<2x32xf32>
    %351 = math.tanh %350 : vector<2x32xf32>
    %352 = vector.extract_strided_slice %337 {offsets = [0, 96], sizes = [2, 32], strides = [1, 1]} : vector<2x128xf32> to vector<2x32xf32>
    %353 = arith.negf %352 : vector<2x32xf32>
    %354 = math.exp %353 : vector<2x32xf32>
    %cst_116 = arith.constant 1.000000e+00 : f32
    %355 = vector.broadcast %cst_116 : f32 to vector<2x32xf32>
    %356 = arith.addf %355, %354 : vector<2x32xf32>
    %357 = arith.divf %355, %356 : vector<2x32xf32>
    %358 = arith.mulf %349, %291 : vector<2x32xf32>
    %359 = arith.mulf %343, %351 : vector<2x32xf32>
    %360 = arith.addf %358, %359 : vector<2x32xf32>
    %361 = math.tanh %360 : vector<2x32xf32>
    %362 = arith.mulf %357, %361 : vector<2x32xf32>
    %363 = vector.extract_strided_slice %9 {offsets = [10, 0], sizes = [2, 32], strides = [1, 1]} : vector<16x32xf32> to vector<2x32xf32>
    %364 = tpu.concatenate %363, %328 in 1 : vector<2x32xf32>, vector<2x32xf32> -> vector<2x64xf32>
    %365 = arith.truncf %364 : vector<2x64xf32> to vector<2x64xbf16>
    %c0_117 = arith.constant 0 : index
    %c0_118 = arith.constant 0 : index
    %c0_119 = arith.constant 0 : index
    %366 = vector.load %arg4[%c0_117, %c0_118, %c0_119] : memref<2x64x128xbf16, #tpu.memory_space<vmem>>, vector<1x64x128xbf16>
    %367 = vector.shape_cast %366 : vector<1x64x128xbf16> to vector<64x128xbf16>
    %cst_120 = arith.constant dense<0.000000e+00> : vector<2x128xf32>
    %368 = tpu.matmul %365, %367, %cst_120 {dimension_numbers = #tpu.dot_dimension_numbers<[1], [0], [0], [1], [0, 0, 1, 1], [], []>} : vector<2x64xbf16>, vector<64x128xbf16>, vector<2x128xf32> -> vector<2x128xf32>
    %c0_121 = arith.constant 0 : index
    %c0_122 = arith.constant 0 : index
    %c0_123 = arith.constant 0 : index
    %369 = vector.load %arg5[%c0_121, %c0_122, %c0_123] : memref<2x1x128xf32, #tpu.memory_space<vmem>>, vector<1x1x128xf32>
    %370 = vector.shape_cast %369 : vector<1x1x128xf32> to vector<1x128xf32>
    %371 = vector.broadcast %370 : vector<1x128xf32> to vector<2x128xf32>
    %372 = arith.addf %368, %371 : vector<2x128xf32>
    %373 = vector.extract_strided_slice %372 {offsets = [0, 0], sizes = [2, 32], strides = [1, 1]} : vector<2x128xf32> to vector<2x32xf32>
    %374 = arith.negf %373 : vector<2x32xf32>
    %375 = math.exp %374 : vector<2x32xf32>
    %cst_124 = arith.constant 1.000000e+00 : f32
    %376 = vector.broadcast %cst_124 : f32 to vector<2x32xf32>
    %377 = arith.addf %376, %375 : vector<2x32xf32>
    %378 = arith.divf %376, %377 : vector<2x32xf32>
    %379 = vector.extract_strided_slice %372 {offsets = [0, 32], sizes = [2, 32], strides = [1, 1]} : vector<2x128xf32> to vector<2x32xf32>
    %380 = arith.negf %379 : vector<2x32xf32>
    %381 = math.exp %380 : vector<2x32xf32>
    %cst_125 = arith.constant 1.000000e+00 : f32
    %382 = vector.broadcast %cst_125 : f32 to vector<2x32xf32>
    %383 = arith.addf %382, %381 : vector<2x32xf32>
    %384 = arith.divf %382, %383 : vector<2x32xf32>
    %385 = vector.extract_strided_slice %372 {offsets = [0, 64], sizes = [2, 32], strides = [1, 1]} : vector<2x128xf32> to vector<2x32xf32>
    %386 = math.tanh %385 : vector<2x32xf32>
    %387 = vector.extract_strided_slice %372 {offsets = [0, 96], sizes = [2, 32], strides = [1, 1]} : vector<2x128xf32> to vector<2x32xf32>
    %388 = arith.negf %387 : vector<2x32xf32>
    %389 = math.exp %388 : vector<2x32xf32>
    %cst_126 = arith.constant 1.000000e+00 : f32
    %390 = vector.broadcast %cst_126 : f32 to vector<2x32xf32>
    %391 = arith.addf %390, %389 : vector<2x32xf32>
    %392 = arith.divf %390, %391 : vector<2x32xf32>
    %393 = arith.mulf %384, %326 : vector<2x32xf32>
    %394 = arith.mulf %378, %386 : vector<2x32xf32>
    %395 = arith.addf %393, %394 : vector<2x32xf32>
    %396 = math.tanh %395 : vector<2x32xf32>
    %397 = arith.mulf %392, %396 : vector<2x32xf32>
    %398 = tpu.concatenate %397, %362 in 1 : vector<2x32xf32>, vector<2x32xf32> -> vector<2x64xf32>
    %399 = arith.truncf %398 : vector<2x64xf32> to vector<2x64xbf16>
    %c1_127 = arith.constant 1 : index
    %c0_128 = arith.constant 0 : index
    %c0_129 = arith.constant 0 : index
    %400 = vector.load %arg4[%c1_127, %c0_128, %c0_129] : memref<2x64x128xbf16, #tpu.memory_space<vmem>>, vector<1x64x128xbf16>
    %401 = vector.shape_cast %400 : vector<1x64x128xbf16> to vector<64x128xbf16>
    %cst_130 = arith.constant dense<0.000000e+00> : vector<2x128xf32>
    %402 = tpu.matmul %399, %401, %cst_130 {dimension_numbers = #tpu.dot_dimension_numbers<[1], [0], [0], [1], [0, 0, 1, 1], [], []>} : vector<2x64xbf16>, vector<64x128xbf16>, vector<2x128xf32> -> vector<2x128xf32>
    %c1_131 = arith.constant 1 : index
    %c0_132 = arith.constant 0 : index
    %c0_133 = arith.constant 0 : index
    %403 = vector.load %arg5[%c1_131, %c0_132, %c0_133] : memref<2x1x128xf32, #tpu.memory_space<vmem>>, vector<1x1x128xf32>
    %404 = vector.shape_cast %403 : vector<1x1x128xf32> to vector<1x128xf32>
    %405 = vector.broadcast %404 : vector<1x128xf32> to vector<2x128xf32>
    %406 = arith.addf %402, %405 : vector<2x128xf32>
    %407 = vector.extract_strided_slice %406 {offsets = [0, 0], sizes = [2, 32], strides = [1, 1]} : vector<2x128xf32> to vector<2x32xf32>
    %408 = arith.negf %407 : vector<2x32xf32>
    %409 = math.exp %408 : vector<2x32xf32>
    %cst_134 = arith.constant 1.000000e+00 : f32
    %410 = vector.broadcast %cst_134 : f32 to vector<2x32xf32>
    %411 = arith.addf %410, %409 : vector<2x32xf32>
    %412 = arith.divf %410, %411 : vector<2x32xf32>
    %413 = vector.extract_strided_slice %406 {offsets = [0, 32], sizes = [2, 32], strides = [1, 1]} : vector<2x128xf32> to vector<2x32xf32>
    %414 = arith.negf %413 : vector<2x32xf32>
    %415 = math.exp %414 : vector<2x32xf32>
    %cst_135 = arith.constant 1.000000e+00 : f32
    %416 = vector.broadcast %cst_135 : f32 to vector<2x32xf32>
    %417 = arith.addf %416, %415 : vector<2x32xf32>
    %418 = arith.divf %416, %417 : vector<2x32xf32>
    %419 = vector.extract_strided_slice %406 {offsets = [0, 64], sizes = [2, 32], strides = [1, 1]} : vector<2x128xf32> to vector<2x32xf32>
    %420 = math.tanh %419 : vector<2x32xf32>
    %421 = vector.extract_strided_slice %406 {offsets = [0, 96], sizes = [2, 32], strides = [1, 1]} : vector<2x128xf32> to vector<2x32xf32>
    %422 = arith.negf %421 : vector<2x32xf32>
    %423 = math.exp %422 : vector<2x32xf32>
    %cst_136 = arith.constant 1.000000e+00 : f32
    %424 = vector.broadcast %cst_136 : f32 to vector<2x32xf32>
    %425 = arith.addf %424, %423 : vector<2x32xf32>
    %426 = arith.divf %424, %425 : vector<2x32xf32>
    %427 = arith.mulf %418, %360 : vector<2x32xf32>
    %428 = arith.mulf %412, %420 : vector<2x32xf32>
    %429 = arith.addf %427, %428 : vector<2x32xf32>
    %430 = math.tanh %429 : vector<2x32xf32>
    %431 = arith.mulf %426, %430 : vector<2x32xf32>
    %432 = vector.extract_strided_slice %9 {offsets = [12, 0], sizes = [2, 32], strides = [1, 1]} : vector<16x32xf32> to vector<2x32xf32>
    %433 = tpu.concatenate %432, %397 in 1 : vector<2x32xf32>, vector<2x32xf32> -> vector<2x64xf32>
    %434 = arith.truncf %433 : vector<2x64xf32> to vector<2x64xbf16>
    %c0_137 = arith.constant 0 : index
    %c0_138 = arith.constant 0 : index
    %c0_139 = arith.constant 0 : index
    %435 = vector.load %arg4[%c0_137, %c0_138, %c0_139] : memref<2x64x128xbf16, #tpu.memory_space<vmem>>, vector<1x64x128xbf16>
    %436 = vector.shape_cast %435 : vector<1x64x128xbf16> to vector<64x128xbf16>
    %cst_140 = arith.constant dense<0.000000e+00> : vector<2x128xf32>
    %437 = tpu.matmul %434, %436, %cst_140 {dimension_numbers = #tpu.dot_dimension_numbers<[1], [0], [0], [1], [0, 0, 1, 1], [], []>} : vector<2x64xbf16>, vector<64x128xbf16>, vector<2x128xf32> -> vector<2x128xf32>
    %c0_141 = arith.constant 0 : index
    %c0_142 = arith.constant 0 : index
    %c0_143 = arith.constant 0 : index
    %438 = vector.load %arg5[%c0_141, %c0_142, %c0_143] : memref<2x1x128xf32, #tpu.memory_space<vmem>>, vector<1x1x128xf32>
    %439 = vector.shape_cast %438 : vector<1x1x128xf32> to vector<1x128xf32>
    %440 = vector.broadcast %439 : vector<1x128xf32> to vector<2x128xf32>
    %441 = arith.addf %437, %440 : vector<2x128xf32>
    %442 = vector.extract_strided_slice %441 {offsets = [0, 0], sizes = [2, 32], strides = [1, 1]} : vector<2x128xf32> to vector<2x32xf32>
    %443 = arith.negf %442 : vector<2x32xf32>
    %444 = math.exp %443 : vector<2x32xf32>
    %cst_144 = arith.constant 1.000000e+00 : f32
    %445 = vector.broadcast %cst_144 : f32 to vector<2x32xf32>
    %446 = arith.addf %445, %444 : vector<2x32xf32>
    %447 = arith.divf %445, %446 : vector<2x32xf32>
    %448 = vector.extract_strided_slice %441 {offsets = [0, 32], sizes = [2, 32], strides = [1, 1]} : vector<2x128xf32> to vector<2x32xf32>
    %449 = arith.negf %448 : vector<2x32xf32>
    %450 = math.exp %449 : vector<2x32xf32>
    %cst_145 = arith.constant 1.000000e+00 : f32
    %451 = vector.broadcast %cst_145 : f32 to vector<2x32xf32>
    %452 = arith.addf %451, %450 : vector<2x32xf32>
    %453 = arith.divf %451, %452 : vector<2x32xf32>
    %454 = vector.extract_strided_slice %441 {offsets = [0, 64], sizes = [2, 32], strides = [1, 1]} : vector<2x128xf32> to vector<2x32xf32>
    %455 = math.tanh %454 : vector<2x32xf32>
    %456 = vector.extract_strided_slice %441 {offsets = [0, 96], sizes = [2, 32], strides = [1, 1]} : vector<2x128xf32> to vector<2x32xf32>
    %457 = arith.negf %456 : vector<2x32xf32>
    %458 = math.exp %457 : vector<2x32xf32>
    %cst_146 = arith.constant 1.000000e+00 : f32
    %459 = vector.broadcast %cst_146 : f32 to vector<2x32xf32>
    %460 = arith.addf %459, %458 : vector<2x32xf32>
    %461 = arith.divf %459, %460 : vector<2x32xf32>
    %462 = arith.mulf %453, %395 : vector<2x32xf32>
    %463 = arith.mulf %447, %455 : vector<2x32xf32>
    %464 = arith.addf %462, %463 : vector<2x32xf32>
    %465 = math.tanh %464 : vector<2x32xf32>
    %466 = arith.mulf %461, %465 : vector<2x32xf32>
    %467 = tpu.concatenate %466, %431 in 1 : vector<2x32xf32>, vector<2x32xf32> -> vector<2x64xf32>
    %468 = arith.truncf %467 : vector<2x64xf32> to vector<2x64xbf16>
    %c1_147 = arith.constant 1 : index
    %c0_148 = arith.constant 0 : index
    %c0_149 = arith.constant 0 : index
    %469 = vector.load %arg4[%c1_147, %c0_148, %c0_149] : memref<2x64x128xbf16, #tpu.memory_space<vmem>>, vector<1x64x128xbf16>
    %470 = vector.shape_cast %469 : vector<1x64x128xbf16> to vector<64x128xbf16>
    %cst_150 = arith.constant dense<0.000000e+00> : vector<2x128xf32>
    %471 = tpu.matmul %468, %470, %cst_150 {dimension_numbers = #tpu.dot_dimension_numbers<[1], [0], [0], [1], [0, 0, 1, 1], [], []>} : vector<2x64xbf16>, vector<64x128xbf16>, vector<2x128xf32> -> vector<2x128xf32>
    %c1_151 = arith.constant 1 : index
    %c0_152 = arith.constant 0 : index
    %c0_153 = arith.constant 0 : index
    %472 = vector.load %arg5[%c1_151, %c0_152, %c0_153] : memref<2x1x128xf32, #tpu.memory_space<vmem>>, vector<1x1x128xf32>
    %473 = vector.shape_cast %472 : vector<1x1x128xf32> to vector<1x128xf32>
    %474 = vector.broadcast %473 : vector<1x128xf32> to vector<2x128xf32>
    %475 = arith.addf %471, %474 : vector<2x128xf32>
    %476 = vector.extract_strided_slice %475 {offsets = [0, 0], sizes = [2, 32], strides = [1, 1]} : vector<2x128xf32> to vector<2x32xf32>
    %477 = arith.negf %476 : vector<2x32xf32>
    %478 = math.exp %477 : vector<2x32xf32>
    %cst_154 = arith.constant 1.000000e+00 : f32
    %479 = vector.broadcast %cst_154 : f32 to vector<2x32xf32>
    %480 = arith.addf %479, %478 : vector<2x32xf32>
    %481 = arith.divf %479, %480 : vector<2x32xf32>
    %482 = vector.extract_strided_slice %475 {offsets = [0, 32], sizes = [2, 32], strides = [1, 1]} : vector<2x128xf32> to vector<2x32xf32>
    %483 = arith.negf %482 : vector<2x32xf32>
    %484 = math.exp %483 : vector<2x32xf32>
    %cst_155 = arith.constant 1.000000e+00 : f32
    %485 = vector.broadcast %cst_155 : f32 to vector<2x32xf32>
    %486 = arith.addf %485, %484 : vector<2x32xf32>
    %487 = arith.divf %485, %486 : vector<2x32xf32>
    %488 = vector.extract_strided_slice %475 {offsets = [0, 64], sizes = [2, 32], strides = [1, 1]} : vector<2x128xf32> to vector<2x32xf32>
    %489 = math.tanh %488 : vector<2x32xf32>
    %490 = vector.extract_strided_slice %475 {offsets = [0, 96], sizes = [2, 32], strides = [1, 1]} : vector<2x128xf32> to vector<2x32xf32>
    %491 = arith.negf %490 : vector<2x32xf32>
    %492 = math.exp %491 : vector<2x32xf32>
    %cst_156 = arith.constant 1.000000e+00 : f32
    %493 = vector.broadcast %cst_156 : f32 to vector<2x32xf32>
    %494 = arith.addf %493, %492 : vector<2x32xf32>
    %495 = arith.divf %493, %494 : vector<2x32xf32>
    %496 = arith.mulf %487, %429 : vector<2x32xf32>
    %497 = arith.mulf %481, %489 : vector<2x32xf32>
    %498 = arith.addf %496, %497 : vector<2x32xf32>
    %499 = math.tanh %498 : vector<2x32xf32>
    %500 = arith.mulf %495, %499 : vector<2x32xf32>
    %501 = vector.extract_strided_slice %9 {offsets = [14, 0], sizes = [2, 32], strides = [1, 1]} : vector<16x32xf32> to vector<2x32xf32>
    %502 = tpu.concatenate %501, %466 in 1 : vector<2x32xf32>, vector<2x32xf32> -> vector<2x64xf32>
    %503 = arith.truncf %502 : vector<2x64xf32> to vector<2x64xbf16>
    %c0_157 = arith.constant 0 : index
    %c0_158 = arith.constant 0 : index
    %c0_159 = arith.constant 0 : index
    %504 = vector.load %arg4[%c0_157, %c0_158, %c0_159] : memref<2x64x128xbf16, #tpu.memory_space<vmem>>, vector<1x64x128xbf16>
    %505 = vector.shape_cast %504 : vector<1x64x128xbf16> to vector<64x128xbf16>
    %cst_160 = arith.constant dense<0.000000e+00> : vector<2x128xf32>
    %506 = tpu.matmul %503, %505, %cst_160 {dimension_numbers = #tpu.dot_dimension_numbers<[1], [0], [0], [1], [0, 0, 1, 1], [], []>} : vector<2x64xbf16>, vector<64x128xbf16>, vector<2x128xf32> -> vector<2x128xf32>
    %c0_161 = arith.constant 0 : index
    %c0_162 = arith.constant 0 : index
    %c0_163 = arith.constant 0 : index
    %507 = vector.load %arg5[%c0_161, %c0_162, %c0_163] : memref<2x1x128xf32, #tpu.memory_space<vmem>>, vector<1x1x128xf32>
    %508 = vector.shape_cast %507 : vector<1x1x128xf32> to vector<1x128xf32>
    %509 = vector.broadcast %508 : vector<1x128xf32> to vector<2x128xf32>
    %510 = arith.addf %506, %509 : vector<2x128xf32>
    %511 = vector.extract_strided_slice %510 {offsets = [0, 0], sizes = [2, 32], strides = [1, 1]} : vector<2x128xf32> to vector<2x32xf32>
    %512 = arith.negf %511 : vector<2x32xf32>
    %513 = math.exp %512 : vector<2x32xf32>
    %cst_164 = arith.constant 1.000000e+00 : f32
    %514 = vector.broadcast %cst_164 : f32 to vector<2x32xf32>
    %515 = arith.addf %514, %513 : vector<2x32xf32>
    %516 = arith.divf %514, %515 : vector<2x32xf32>
    %517 = vector.extract_strided_slice %510 {offsets = [0, 32], sizes = [2, 32], strides = [1, 1]} : vector<2x128xf32> to vector<2x32xf32>
    %518 = arith.negf %517 : vector<2x32xf32>
    %519 = math.exp %518 : vector<2x32xf32>
    %cst_165 = arith.constant 1.000000e+00 : f32
    %520 = vector.broadcast %cst_165 : f32 to vector<2x32xf32>
    %521 = arith.addf %520, %519 : vector<2x32xf32>
    %522 = arith.divf %520, %521 : vector<2x32xf32>
    %523 = vector.extract_strided_slice %510 {offsets = [0, 64], sizes = [2, 32], strides = [1, 1]} : vector<2x128xf32> to vector<2x32xf32>
    %524 = math.tanh %523 : vector<2x32xf32>
    %525 = vector.extract_strided_slice %510 {offsets = [0, 96], sizes = [2, 32], strides = [1, 1]} : vector<2x128xf32> to vector<2x32xf32>
    %526 = arith.negf %525 : vector<2x32xf32>
    %527 = math.exp %526 : vector<2x32xf32>
    %cst_166 = arith.constant 1.000000e+00 : f32
    %528 = vector.broadcast %cst_166 : f32 to vector<2x32xf32>
    %529 = arith.addf %528, %527 : vector<2x32xf32>
    %530 = arith.divf %528, %529 : vector<2x32xf32>
    %531 = arith.mulf %522, %464 : vector<2x32xf32>
    %532 = arith.mulf %516, %524 : vector<2x32xf32>
    %533 = arith.addf %531, %532 : vector<2x32xf32>
    %534 = math.tanh %533 : vector<2x32xf32>
    %535 = arith.mulf %530, %534 : vector<2x32xf32>
    %536 = tpu.concatenate %535, %500 in 1 : vector<2x32xf32>, vector<2x32xf32> -> vector<2x64xf32>
    %537 = arith.truncf %536 : vector<2x64xf32> to vector<2x64xbf16>
    %c1_167 = arith.constant 1 : index
    %c0_168 = arith.constant 0 : index
    %c0_169 = arith.constant 0 : index
    %538 = vector.load %arg4[%c1_167, %c0_168, %c0_169] : memref<2x64x128xbf16, #tpu.memory_space<vmem>>, vector<1x64x128xbf16>
    %539 = vector.shape_cast %538 : vector<1x64x128xbf16> to vector<64x128xbf16>
    %cst_170 = arith.constant dense<0.000000e+00> : vector<2x128xf32>
    %540 = tpu.matmul %537, %539, %cst_170 {dimension_numbers = #tpu.dot_dimension_numbers<[1], [0], [0], [1], [0, 0, 1, 1], [], []>} : vector<2x64xbf16>, vector<64x128xbf16>, vector<2x128xf32> -> vector<2x128xf32>
    %c1_171 = arith.constant 1 : index
    %c0_172 = arith.constant 0 : index
    %c0_173 = arith.constant 0 : index
    %541 = vector.load %arg5[%c1_171, %c0_172, %c0_173] : memref<2x1x128xf32, #tpu.memory_space<vmem>>, vector<1x1x128xf32>
    %542 = vector.shape_cast %541 : vector<1x1x128xf32> to vector<1x128xf32>
    %543 = vector.broadcast %542 : vector<1x128xf32> to vector<2x128xf32>
    %544 = arith.addf %540, %543 : vector<2x128xf32>
    %545 = vector.extract_strided_slice %544 {offsets = [0, 0], sizes = [2, 32], strides = [1, 1]} : vector<2x128xf32> to vector<2x32xf32>
    %546 = arith.negf %545 : vector<2x32xf32>
    %547 = math.exp %546 : vector<2x32xf32>
    %cst_174 = arith.constant 1.000000e+00 : f32
    %548 = vector.broadcast %cst_174 : f32 to vector<2x32xf32>
    %549 = arith.addf %548, %547 : vector<2x32xf32>
    %550 = arith.divf %548, %549 : vector<2x32xf32>
    %551 = vector.extract_strided_slice %544 {offsets = [0, 32], sizes = [2, 32], strides = [1, 1]} : vector<2x128xf32> to vector<2x32xf32>
    %552 = arith.negf %551 : vector<2x32xf32>
    %553 = math.exp %552 : vector<2x32xf32>
    %cst_175 = arith.constant 1.000000e+00 : f32
    %554 = vector.broadcast %cst_175 : f32 to vector<2x32xf32>
    %555 = arith.addf %554, %553 : vector<2x32xf32>
    %556 = arith.divf %554, %555 : vector<2x32xf32>
    %557 = vector.extract_strided_slice %544 {offsets = [0, 64], sizes = [2, 32], strides = [1, 1]} : vector<2x128xf32> to vector<2x32xf32>
    %558 = math.tanh %557 : vector<2x32xf32>
    %559 = vector.extract_strided_slice %544 {offsets = [0, 96], sizes = [2, 32], strides = [1, 1]} : vector<2x128xf32> to vector<2x32xf32>
    %560 = arith.negf %559 : vector<2x32xf32>
    %561 = math.exp %560 : vector<2x32xf32>
    %cst_176 = arith.constant 1.000000e+00 : f32
    %562 = vector.broadcast %cst_176 : f32 to vector<2x32xf32>
    %563 = arith.addf %562, %561 : vector<2x32xf32>
    %564 = arith.divf %562, %563 : vector<2x32xf32>
    %565 = arith.mulf %556, %498 : vector<2x32xf32>
    %566 = arith.mulf %550, %558 : vector<2x32xf32>
    %567 = arith.addf %565, %566 : vector<2x32xf32>
    %568 = math.tanh %567 : vector<2x32xf32>
    %569 = arith.mulf %564, %568 : vector<2x32xf32>
    %c0_177 = arith.constant 0 : index
    %c0_178 = arith.constant 0 : index
    %c0_179 = arith.constant 0 : index
    %570 = vector.load %arg11[%c0_177, %c0_178, %c0_179] : memref<2x2x32xf32, #tpu.memory_space<vmem>>, vector<1x2x32xf32>
    %571 = vector.shape_cast %570 : vector<1x2x32xf32> to vector<2x32xf32>
    %572 = vector.shape_cast %535 : vector<2x32xf32> to vector<1x2x32xf32>
    tpu.vector_store %arg11[%c0_177, %c0_178, %c0_179], %572 {strides = array<i32>} : memref<2x2x32xf32, #tpu.memory_space<vmem>>, vector<1x2x32xf32>,
    %c0_180 = arith.constant 0 : index
    %c0_181 = arith.constant 0 : index
    %c0_182 = arith.constant 0 : index
    %573 = vector.load %arg12[%c0_180, %c0_181, %c0_182] : memref<2x2x32xf32, #tpu.memory_space<vmem>>, vector<1x2x32xf32>
    %574 = vector.shape_cast %573 : vector<1x2x32xf32> to vector<2x32xf32>
    %575 = vector.shape_cast %533 : vector<2x32xf32> to vector<1x2x32xf32>
    tpu.vector_store %arg12[%c0_180, %c0_181, %c0_182], %575 {strides = array<i32>} : memref<2x2x32xf32, #tpu.memory_space<vmem>>, vector<1x2x32xf32>,
    %c1_183 = arith.constant 1 : index
    %c0_184 = arith.constant 0 : index
    %c0_185 = arith.constant 0 : index
    %576 = vector.load %arg11[%c1_183, %c0_184, %c0_185] : memref<2x2x32xf32, #tpu.memory_space<vmem>>, vector<1x2x32xf32>
    %577 = vector.shape_cast %576 : vector<1x2x32xf32> to vector<2x32xf32>
    %578 = vector.shape_cast %569 : vector<2x32xf32> to vector<1x2x32xf32>
    tpu.vector_store %arg11[%c1_183, %c0_184, %c0_185], %578 {strides = array<i32>} : memref<2x2x32xf32, #tpu.memory_space<vmem>>, vector<1x2x32xf32>,
    %c1_186 = arith.constant 1 : index
    %c0_187 = arith.constant 0 : index
    %c0_188 = arith.constant 0 : index
    %579 = vector.load %arg12[%c1_186, %c0_187, %c0_188] : memref<2x2x32xf32, #tpu.memory_space<vmem>>, vector<1x2x32xf32>
    %580 = vector.shape_cast %579 : vector<1x2x32xf32> to vector<2x32xf32>
    %581 = vector.shape_cast %567 : vector<2x32xf32> to vector<1x2x32xf32>
    tpu.vector_store %arg12[%c1_186, %c0_187, %c0_188], %581 {strides = array<i32>} : memref<2x2x32xf32, #tpu.memory_space<vmem>>, vector<1x2x32xf32>,
    %582 = tpu.concatenate %86, %155, %224, %293, %362, %431, %500, %569 in 0 : vector<2x32xf32>, vector<2x32xf32>, vector<2x32xf32>, vector<2x32xf32>, vector<2x32xf32>, vector<2x32xf32>, vector<2x32xf32>, vector<2x32xf32> -> vector<16x32xf32>
    %583 = arith.truncf %582 : vector<16x32xf32> to vector<16x32xbf16>
    %c0_189 = arith.constant 0 : index
    %c0_190 = arith.constant 0 : index
    %584 = vector.load %arg8[%c0_189, %c0_190] : memref<32x128xbf16, #tpu.memory_space<vmem>>, vector<32x128xbf16>
    %cst_191 = arith.constant dense<0.000000e+00> : vector<16x128xf32>
    %585 = tpu.matmul %583, %584, %cst_191 {dimension_numbers = #tpu.dot_dimension_numbers<[1], [0], [0], [1], [0, 0, 1, 1], [], []>} : vector<16x32xbf16>, vector<32x128xbf16>, vector<16x128xf32> -> vector<16x128xf32>
    %c0_192 = arith.constant 0 : index
    %c0_193 = arith.constant 0 : index
    %586 = vector.load %arg9[%c0_192, %c0_193] : memref<1x128xf32, #tpu.memory_space<vmem>>, vector<1x128xf32>
    %587 = vector.broadcast %586 : vector<1x128xf32> to vector<16x128xf32>
    %588 = arith.addf %585, %587 : vector<16x128xf32>
    %c0_194 = arith.constant 0 : index
    %c0_195 = arith.constant 0 : index
    %589 = vector.load %arg10[%c0_194, %c0_195] : memref<16x128xf32, #tpu.memory_space<vmem>>, vector<16x128xf32>
    tpu.vector_store %arg10[%c0_194, %c0_195], %588 {strides = array<i32>} : memref<16x128xf32, #tpu.memory_space<vmem>>, vector<16x128xf32>,
    return
  }
  func.func @transform_0(%arg0: i32) -> (i32, i32) {
    %c0_i32 = arith.constant 0 : i32
    %c0_i32_0 = arith.constant 0 : i32
    return %arg0, %c0_i32 : i32, i32
  }
  func.func @transform_1(%arg0: i32) -> (i32, i32) {
    %c0_i32 = arith.constant 0 : i32
    %c0_i32_0 = arith.constant 0 : i32
    %c0_i32_1 = arith.constant 0 : i32
    return %c0_i32, %c0_i32_0 : i32, i32
  }
  func.func @transform_2(%arg0: i32) -> (i32, i32) {
    %c0_i32 = arith.constant 0 : i32
    %c0_i32_0 = arith.constant 0 : i32
    %c0_i32_1 = arith.constant 0 : i32
    return %c0_i32, %c0_i32_0 : i32, i32
  }
  func.func @transform_3(%arg0: i32) -> (i32, i32, i32) {
    %c0_i32 = arith.constant 0 : i32
    %c0_i32_0 = arith.constant 0 : i32
    %c0_i32_1 = arith.constant 0 : i32
    %c0_i32_2 = arith.constant 0 : i32
    return %c0_i32, %c0_i32_0, %c0_i32_1 : i32, i32, i32
  }
  func.func @transform_4(%arg0: i32) -> (i32, i32, i32) {
    %c0_i32 = arith.constant 0 : i32
    %c0_i32_0 = arith.constant 0 : i32
    %c0_i32_1 = arith.constant 0 : i32
    %c0_i32_2 = arith.constant 0 : i32
    return %c0_i32, %c0_i32_0, %c0_i32_1 : i32, i32, i32
  }
  func.func @transform_5(%arg0: i32) -> (i32, i32, i32) {
    %c0_i32 = arith.constant 0 : i32
    %c0_i32_0 = arith.constant 0 : i32
    %c0_i32_1 = arith.constant 0 : i32
    %c0_i32_2 = arith.constant 0 : i32
    return %c0_i32, %c0_i32_0, %c0_i32_1 : i32, i32, i32
  }
  func.func @transform_6(%arg0: i32) -> (i32, i32, i32) {
    %c0_i32 = arith.constant 0 : i32
    %c0_i32_0 = arith.constant 0 : i32
    %c0_i32_1 = arith.constant 0 : i32
    %c0_i32_2 = arith.constant 0 : i32
    return %c0_i32, %c0_i32_0, %c0_i32_1 : i32, i32, i32
  }
  func.func @transform_7(%arg0: i32) -> (i32, i32) {
    %c0_i32 = arith.constant 0 : i32
    %c0_i32_0 = arith.constant 0 : i32
    %c0_i32_1 = arith.constant 0 : i32
    return %c0_i32, %c0_i32_0 : i32, i32
  }
  func.func @transform_8(%arg0: i32) -> (i32, i32) {
    %c0_i32 = arith.constant 0 : i32
    %c0_i32_0 = arith.constant 0 : i32
    %c0_i32_1 = arith.constant 0 : i32
    return %c0_i32, %c0_i32_0 : i32, i32
  }
  func.func @transform_9(%arg0: i32) -> (i32, i32) {
    %c0_i32 = arith.constant 0 : i32
    %c0_i32_0 = arith.constant 0 : i32
    return %arg0, %c0_i32 : i32, i32
  }
  func.func @transform_10(%arg0: i32) -> (i32, i32, i32) {
    %c0_i32 = arith.constant 0 : i32
    %c0_i32_0 = arith.constant 0 : i32
    %c0_i32_1 = arith.constant 0 : i32
    %c0_i32_2 = arith.constant 0 : i32
    return %c0_i32, %c0_i32_0, %c0_i32_1 : i32, i32, i32
  }
  func.func @transform_11(%arg0: i32) -> (i32, i32, i32) {
    %c0_i32 = arith.constant 0 : i32
    %c0_i32_0 = arith.constant 0 : i32
    %c0_i32_1 = arith.constant 0 : i32
    %c0_i32_2 = arith.constant 0 : i32
    return %c0_i32, %c0_i32_0, %c0_i32_1 : i32, i32, i32
  }
}

</mosaic_0001>

<llo_original>
// kernel: tpu_custom_call.1
$region0: #{tpu_custom_call.1}
  #allocation0 [shape = 'u32[]', space=smem, size = 0x4, offset = 0x4, fixed_abs, tag = 'smem constant byte address 0x4 - core index']
  #allocation1 [shape = 'u32[72,128]{1,0:T(1,128)}', space=vmem, size = 0x9000, scoped, tag = 'internal scratch']
  %s0 = inlined_call_operand.vmem [shape: f32[16,4], index: 0, kind: input, shape index: {}]
  %s1 = inlined_call_operand.vmem [shape: bf16[4,32], index: 1, kind: input, shape index: {}]
  %s2 = inlined_call_operand.hbm [shape: f32[1,32], index: 2, kind: input, shape index: {}]
  %s3 = inlined_call_operand.hbm [shape: bf16[2,64,128], index: 3, kind: input, shape index: {}]
  %s4 = inlined_call_operand.hbm [shape: f32[2,1,128], index: 4, kind: input, shape index: {}]
  %s5 = inlined_call_operand.vmem [shape: f32[2,2,32], index: 5, kind: input, shape index: {}]
  %s6 = inlined_call_operand.vmem [shape: f32[2,2,32], index: 6, kind: input, shape index: {}]
  %s7 = inlined_call_operand.vmem [shape: bf16[32,128], index: 7, kind: input, shape index: {}]
  %s8 = inlined_call_operand.vmem [shape: f32[1,128], index: 8, kind: input, shape index: {}]
  %s9 = inlined_call_operand.hbm [shape: f32[16,128], index: 9, kind: output, shape index: {0}]
  %s10 = inlined_call_operand.hbm [shape: f32[2,2,32], index: 10, kind: output, shape index: {1}]
  %s11 = inlined_call_operand.hbm [shape: f32[2,2,32], index: 11, kind: output, shape index: {2}]
  %12 = xla_tuple %s9, %s10, %s11
  %s13 = sld [smem:[#allocation0]]
  $region78: #{tpu_custom_call.1} parent=0
    _
  %s15 = ssub.s32 1, %s13
  %s16 = scalar_select 0, %s15, %s13
  $region1: #{tpu_custom_call.1} parent=0
    #allocation2 [shape = 'u8[512]{0}', space=vmem, size = 0x400, scoped, tag = 'input window, operand 2, single buffered']
    #allocation3 [shape = 's32[1]{0}', space=sflag, size = 0x4, scoped, tag = 'scoped memory for tpu_custom_call.1']
    #allocation4 [shape = 's32[1]{0}', space=sflag, size = 0x4, scoped, tag = 'scoped memory for tpu_custom_call.1']
    #allocation5 [shape = 'u8[32768]{0}', space=vmem, size = 0x8000, scoped, tag = 'input window, operand 3, single buffered']
    #allocation6 [shape = 's32[1]{0}', space=sflag, size = 0x4, scoped, tag = 'scoped memory for tpu_custom_call.1']
    #allocation7 [shape = 'u8[1024]{0}', space=vmem, size = 0x400, scoped, tag = 'input window, operand 4, single buffered']
    #allocation8 [shape = 'u8[8192]{0}', space=vmem, size = 0x2000, scoped, tag = 'output window, operand 0, single buffered']
    #allocation9 [shape = 'u8[2048]{0}', space=vmem, size = 0x800, scoped, tag = 'output window, operand 1, single buffered']
    #allocation10 [shape = 's32[1]{0}', space=sflag, size = 0x4, scoped, tag = 'scoped memory for tpu_custom_call.1']
    #allocation11 [shape = 'u8[2048]{0}', space=vmem, size = 0x800, scoped, tag = 'output window, operand 2, single buffered']
    %17 = vsyncpa [#allocation3], 0
    %18 = vsyncpa [#allocation6], 0
    %19 = vsyncpa [#allocation4], 0
    %20 = vsyncpa [#allocation10], 0
    // Predicated region
    $region2: #{tpu_custom_call.1} parent=1 // pred_check
      _
    $region3: #{tpu_custom_call.1} parent=1 // pred_check_branch
      %22 = sbr.rel (0) target = $region5
    $region4: #{tpu_custom_call.1} parent=1 // pred_region
      _
    $region5: #{tpu_custom_call.1} parent=1 // pred_fallthru
      _
    // Predicated region
    $region6: #{tpu_custom_call.1} parent=1 // pred_check
      _
    $region7: #{tpu_custom_call.1} parent=1 // pred_check_branch
      %24 = sbr.rel (0) target = $region9
    $region8: #{tpu_custom_call.1} parent=1 // pred_region
      _
    $region9: #{tpu_custom_call.1} parent=1 // pred_fallthru
      _
    // Predicated region
    $region10: #{tpu_custom_call.1} parent=1 // pred_check
      _
    $region11: #{tpu_custom_call.1} parent=1 // pred_check_branch
      %26 = sbr.rel (0) target = $region13
    $region12: #{tpu_custom_call.1} parent=1 // pred_region
      %28 = vsyncadd [#allocation3], 0
      %s30 = sshll.u32 %s2, 4
      %s31 = int_to_ptr.hbm [resolvable:$true] %s30
      %s32 = sshll.u32 [#allocation2], 4
      %s33 = int_to_ptr.vmem [resolvable:$true] %s32
      %35 = dma.hbm_to_vmem [thread:$0]  %s31, 16, %s33, [#allocation3]
    $region13: #{tpu_custom_call.1} parent=1 // pred_fallthru
      _
    // Predicated region
    $region14: #{tpu_custom_call.1} parent=1 // pred_check
      _
    $region15: #{tpu_custom_call.1} parent=1 // pred_check_branch
      %37 = sbr.rel (0) target = $region17
    $region16: #{tpu_custom_call.1} parent=1 // pred_region
      %39 = vsyncadd [#allocation6], 0
      %s40 = sshll.u32 %s3, 4
      %s41 = int_to_ptr.hbm [resolvable:$true] %s40
      %s42 = sshll.u32 [#allocation5], 4
      %s43 = int_to_ptr.vmem [resolvable:$true] %s42
      %48 = dma.hbm_to_vmem [thread:$0]  %s41, 1024, %s43, [#allocation6], 64, 64, 4
    $region17: #{tpu_custom_call.1} parent=1 // pred_fallthru
      _
    // Predicated region
    $region18: #{tpu_custom_call.1} parent=1 // pred_check
      _
    $region19: #{tpu_custom_call.1} parent=1 // pred_check_branch
      %50 = sbr.rel (0) target = $region21
    $region20: #{tpu_custom_call.1} parent=1 // pred_region
      %52 = vsyncadd [#allocation6], 0
      %s53 = sshll.u32 %s4, 4
      %s54 = int_to_ptr.hbm [resolvable:$true] %s53
      %s55 = sshll.u32 [#allocation7], 4
      %s56 = int_to_ptr.vmem [resolvable:$true] %s55
      %61 = dma.hbm_to_vmem [thread:$0]  %s54, 32, %s56, [#allocation6], 16, 16, 1
    $region21: #{tpu_custom_call.1} parent=1 // pred_fallthru
      _
    // Predicated region
    $region22: #{tpu_custom_call.1} parent=1 // pred_check
      _
    $region23: #{tpu_custom_call.1} parent=1 // pred_check_branch
      %63 = sbr.rel (0) target = $region25
    $region24: #{tpu_custom_call.1} parent=1 // pred_region
      _
    $region25: #{tpu_custom_call.1} parent=1 // pred_fallthru
      _
    // Predicated region
    $region26: #{tpu_custom_call.1} parent=1 // pred_check
      _
    $region27: #{tpu_custom_call.1} parent=1 // pred_check_branch
      %65 = sbr.rel (0) target = $region29
    $region28: #{tpu_custom_call.1} parent=1 // pred_region
      _
    $region29: #{tpu_custom_call.1} parent=1 // pred_fallthru
      _
    // Predicated region
    $region30: #{tpu_custom_call.1} parent=1 // pred_check
      _
    $region31: #{tpu_custom_call.1} parent=1 // pred_check_branch
      %67 = sbr.rel (0) target = $region33
    $region32: #{tpu_custom_call.1} parent=1 // pred_region
      _
    $region33: #{tpu_custom_call.1} parent=1 // pred_fallthru
      _
    // Predicated region
    $region34: #{tpu_custom_call.1} parent=1 // pred_check
      _
    $region35: #{tpu_custom_call.1} parent=1 // pred_check_branch
      %69 = sbr.rel (0) target = $region37
    $region36: #{tpu_custom_call.1} parent=1 // pred_region
      _
    $region37: #{tpu_custom_call.1} parent=1 // pred_fallthru
      _
    // Predicated region
    $region38: #{tpu_custom_call.1} parent=1 // pred_check
      _
    $region39: #{tpu_custom_call.1} parent=1 // pred_check_branch
      %71 = sbr.rel (0) target = $region41
    $region40: #{tpu_custom_call.1} parent=1 // pred_region
      %73 = dma.done [#allocation3], 16
    $region41: #{tpu_custom_call.1} parent=1 // pred_fallthru
      _
    // Predicated region
    $region42: #{tpu_custom_call.1} parent=1 // pred_check
      _
    $region43: #{tpu_custom_call.1} parent=1 // pred_check_branch
      %75 = sbr.rel (0) target = $region45
    $region44: #{tpu_custom_call.1} parent=1 // pred_region
      %77 = dma.done [#allocation6], 1024
    $region45: #{tpu_custom_call.1} parent=1 // pred_fallthru
      _
    // Predicated region
    $region46: #{tpu_custom_call.1} parent=1 // pred_check
      _
    $region47: #{tpu_custom_call.1} parent=1 // pred_check_branch
      %79 = sbr.rel (0) target = $region49
    $region48: #{tpu_custom_call.1} parent=1 // pred_region
      %81 = dma.done [#allocation6], 32
    $region49: #{tpu_custom_call.1} parent=1 // pred_fallthru
      _
    %p83 = scmp.eq.s32.totalorder 0, 0
    // Predicated region
    $region50: #{tpu_custom_call.1} parent=1 // pred_check
      %p84 = pneg %p83
    $region51: #{tpu_custom_call.1} parent=1 // pred_check_branch
      %86 = sbr.rel (%p84) target = $region53
    $region52: #{tpu_custom_call.1} parent=1 // pred_region
      %v87 = vld [vmem:[%s5] sm:$0x3]
      %v88 = vld [vmem:[%s5 + $0x2] sm:$0x3]
      %vm89 = vcmask 254976
      %90 = vst.msk [vmem:[#allocation9] sm:$0x3] %vm89, %v87
      %91 = vst.msk [vmem:[#allocation9 + $0x2] sm:$0x3] %vm89, %v88
      %v92 = vld [vmem:[%s6] sm:$0x3]
      %v93 = vld [vmem:[%s6 + $0x2] sm:$0x3]
      %94 = vst.msk [vmem:[#allocation11] sm:$0x3] %vm89, %v92
      %95 = vst.msk [vmem:[#allocation11 + $0x2] sm:$0x3] %vm89, %v93
    $region53: #{tpu_custom_call.1} parent=1 // pred_fallthru
      _
    %v96 = vld [vmem:[%s0] sm:$0xff]
    %v97 = vld [vmem:[%s0 + $0x8] sm:$0xff]
    %v98 = vpack.c.bf16 %v97, %v96
    %v99 = vld [vmem:[%s1] sm:$0x3]
    %v100 = vld [vmem:[#allocation2] sm:$0x1]
    %v102 = vperm.slane %v100, 0
    %vm104 = vcmask 31744
    %v106 = vsel %vm104, %v98, 0
    %vm108 = vcmask 1041408
    %v110 = vsel %vm108, %v99, 0
    %112 = vmatpush.bf16.msra.mxu0 0
    %113 = vmatpush.bf16.msra.mxu0 0
    %114 = vmatpush.bf16.msra.mxu0 0
    %115 = vmatpush.bf16.msra.mxu0 0
    %116 = vmatpush.bf16.msra.mxu0 0
    %117 = vmatpush.bf16.msra.mxu0 0
    %118 = vmatpush.bf16.msra.mxu0 0
    %119 = vmatpush.bf16.msra.mxu0 %v110
    %120 = vmatmul.bf16.gmra.mxu0 %v106
    %v121 = vpop.f32.mrf.mxu0
    %v122 = vadd.f32 %v102, %v121
    %v123 = vpop.f32.mrf.mxu0
    %v124 = vadd.f32 %v102, %v123
    %125 = vdwg.mxu0
    %v126 = vld [vmem:[#allocation9] sm:$0x3]
    %s127 = scalar_lea.vmem [#allocation9], 2
    %v128 = vld [vmem:[%s127] sm:$0x3]
    %v129 = vld [vmem:[#allocation11] sm:$0x3]
    %s130 = scalar_lea.vmem [#allocation11], 2
    %v131 = vld [vmem:[%s130] sm:$0x3]
    %133 = vrot.lane.b32.xlu0 %v126, 32
    %v134 = vpop.permute.xlu0 %133
    %vm136 = vcmask 261120
    %v137 = vsel %vm136, %v122, %v134
    %v138 = vpack.c.bf16 %v137, %v137
    %v139 = vld [vmem:[#allocation5] sm:$0xf]
    %v140 = vld [vmem:[#allocation5 + $0x4] sm:$0xf]
    %v141 = vld [vmem:[#allocation5 + $0x8] sm:$0xf]
    %v142 = vld [vmem:[#allocation5 + $0xc] sm:$0xf]
    %v143 = vld [vmem:[#allocation5 + $0x10] sm:$0xf]
    %v144 = vld [vmem:[#allocation5 + $0x14] sm:$0xf]
    %v145 = vld [vmem:[#allocation5 + $0x18] sm:$0xf]
    %v146 = vld [vmem:[#allocation5 + $0x1c] sm:$0xf]
    %v147 = vld [vmem:[#allocation7] sm:$0x1]
    %v149 = vperm.slane %v147, 0
    %v159 = vunpack.c.l.b16 %v139
    %v160 = vunpack.c.l.b16 %v140
    %v161 = vunpack.c.l.b16 %v141
    %v162 = vunpack.c.l.b16 %v142
    %v163 = vunpack.c.l.b16 %v143
    %v164 = vunpack.c.l.b16 %v144
    %v165 = vunpack.c.l.b16 %v145
    %v166 = vunpack.c.l.b16 %v146
    %v167 = vpack.c.b16 %v160, %v159
    %v168 = vpack.c.b16 %v162, %v161
    %v169 = vpack.c.b16 %v164, %v163
    %v170 = vpack.c.b16 %v166, %v165
    %vm175 = vcmask 523264
    %v177 = vsel %vm175, %v138, 0
    %179 = vmatpush.bf16.msra.mxu0 0
    %180 = vmatpush.bf16.msra.mxu0 0
    %181 = vmatpush.bf16.msra.mxu0 0
    %182 = vmatpush.bf16.msra.mxu0 0
    %183 = vmatpush.bf16.msra.mxu0 %v170
    %184 = vmatpush.bf16.msra.mxu0 %v169
    %185 = vmatpush.bf16.msra.mxu0 %v168
    %186 = vmatpush.bf16.msra.mxu0 %v167
    %187 = vmatmul.bf16.gmra.mxu0 %v177
    %v188 = vpop.f32.mrf.mxu0
    %v189 = vadd.f32 %v149, %v188
    %v190 = vpop.f32.mrf.mxu0
    %191 = vdwg.mxu0
    %v192 = vxor.u32 %v189, 2147483648
    %v193 = vmul.f32 %v192, 1.442695
    %v194 = vpow.pop %v193
    %v195 = vadd.f32 %v194, 1.0
    %v196 = vrcp.pop %v195
    %v197 = vmul.f32 %v195, %v196
    %v198 = vsub.f32 1.0, %v197
    %v199 = vmul.f32 %v196, %v198
    %v200 = vadd.f32 %v196, %v199
    %vm201 = vweird.f32 %v195
    %vm202 = vweird.f32 %v196
    %vm203 = vmor %vm201, %vm202
    %v204 = vsel %vm203, %v196, %v200
    %v205 = vand.u32 2147483647, %v195
    %vm206 = vcmp.eq.f32.partialorder %v205, 8.507059e+37
    %v207 = vand.u32 %v195, 2147483648
    %v208 = vor.u32 1.1754944e-38, %v207
    %v209 = vsel %vm206, %v208, %v204
    %v210 = vmul.f32 1.0, %v209
    %v211 = vtanh.pop %v189
    %213 = vrot.lane.b32.xlu0 %v129, 32
    %v214 = vpop.permute.xlu0 %213
    %v216 = vmul.f32 %v210, %v214
    %218 = vrot.lane.b32.xlu0 %v211, 64
    %v219 = vpop.permute.xlu0 %218
    %v221 = vmul.f32 %v210, %v219
    %223 = vrot.lane.b32.xlu0 %v221, 32
    %v224 = vpop.permute.xlu0 %223
    %v226 = vadd.f32 %v216, %v224
    %v227 = vtanh.pop %v226
    %229 = vrot.lane.b32.xlu0 %v227, 64
    %v230 = vpop.permute.xlu0 %229
    %v232 = vmul.f32 %v210, %v230
    %234 = vrot.lane.b32.xlu0 %v232, 32
    %v235 = vpop.permute.xlu0 %234
    %238 = vrot.lane.b32.xlu0 %v128, 32
    %v239 = vpop.permute.xlu0 %238
    %v241 = vsel %vm136, %v235, %v239
    %v242 = vpack.c.bf16 %v241, %v241
    %s243 = scalar_lea.vmem [#allocation5], 32
    %v244 = vld [vmem:[%s243] sm:$0xf]
    %v245 = vld [vmem:[%s243 + $0x4] sm:$0xf]
    %v246 = vld [vmem:[%s243 + $0x8] sm:$0xf]
    %v247 = vld [vmem:[%s243 + $0xc] sm:$0xf]
    %v248 = vld [vmem:[%s243 + $0x10] sm:$0xf]
    %v249 = vld [vmem:[%s243 + $0x14] sm:$0xf]
    %v250 = vld [vmem:[%s243 + $0x18] sm:$0xf]
    %v251 = vld [vmem:[%s243 + $0x1c] sm:$0xf]
    %s252 = scalar_lea.vmem [#allocation7], 1
    %v253 = vld [vmem:[%s252] sm:$0x1]
    %v255 = vperm.slane %v253, 0
    %v265 = vunpack.c.l.b16 %v244
    %v266 = vunpack.c.l.b16 %v245
    %v267 = vunpack.c.l.b16 %v246
    %v268 = vunpack.c.l.b16 %v247
    %v269 = vunpack.c.l.b16 %v248
    %v270 = vunpack.c.l.b16 %v249
    %v271 = vunpack.c.l.b16 %v250
    %v272 = vunpack.c.l.b16 %v251
    %v273 = vpack.c.b16 %v266, %v265
    %v274 = vpack.c.b16 %v268, %v267
    %v275 = vpack.c.b16 %v270, %v269
    %v276 = vpack.c.b16 %v272, %v271
    %v282 = vsel %vm175, %v242, 0
    %284 = vmatpush.bf16.msra.mxu0 0
    %285 = vmatpush.bf16.msra.mxu0 0
    %286 = vmatpush.bf16.msra.mxu0 0
    %287 = vmatpush.bf16.msra.mxu0 0
    %288 = vmatpush.bf16.msra.mxu0 %v276
    %289 = vmatpush.bf16.msra.mxu0 %v275
    %290 = vmatpush.bf16.msra.mxu0 %v274
    %291 = vmatpush.bf16.msra.mxu0 %v273
    %292 = vmatmul.bf16.gmra.mxu0 %v282
    %v293 = vpop.f32.mrf.mxu0
    %v294 = vadd.f32 %v255, %v293
    %v295 = vpop.f32.mrf.mxu0
    %296 = vdwg.mxu0
    %v297 = vxor.u32 %v294, 2147483648
    %v298 = vmul.f32 %v297, 1.442695
    %v299 = vpow.pop %v298
    %v300 = vadd.f32 %v299, 1.0
    %v301 = vrcp.pop %v300
    %v302 = vmul.f32 %v300, %v301
    %v303 = vsub.f32 1.0, %v302
    %v304 = vmul.f32 %v301, %v303
    %v305 = vadd.f32 %v301, %v304
    %vm306 = vweird.f32 %v300
    %vm307 = vweird.f32 %v301
    %vm308 = vmor %vm306, %vm307
    %v309 = vsel %vm308, %v301, %v305
    %v310 = vand.u32 2147483647, %v300
    %vm311 = vcmp.eq.f32.partialorder %v310, 8.507059e+37
    %v312 = vand.u32 %v300, 2147483648
    %v313 = vor.u32 1.1754944e-38, %v312
    %v314 = vsel %vm311, %v313, %v309
    %v315 = vmul.f32 1.0, %v314
    %v316 = vtanh.pop %v294
    %318 = vrot.lane.b32.xlu0 %v131, 32
    %v319 = vpop.permute.xlu0 %318
    %v321 = vmul.f32 %v315, %v319
    %323 = vrot.lane.b32.xlu0 %v316, 64
    %v324 = vpop.permute.xlu0 %323
    %v326 = vmul.f32 %v315, %v324
    %328 = vrot.lane.b32.xlu0 %v326, 32
    %v329 = vpop.permute.xlu0 %328
    %v331 = vadd.f32 %v321, %v329
    %v332 = vtanh.pop %v331
    %334 = vrot.lane.b32.xlu0 %v332, 64
    %v335 = vpop.permute.xlu0 %334
    %v337 = vmul.f32 %v315, %v335
    %v338 = vrot.slane %v232, 6
    %339 = vrot.lane.b32.xlu0 %v338, 64
    %v340 = vpop.permute.xlu0 %339
    %v342 = vsel %vm136, %v122, %v340
    %v343 = vpack.c.bf16 %v342, %v342
    %v345 = vrot.slane %v343, 1
    %v347 = vsel %vm175, %v345, 0
    %349 = vmatpush.bf16.msra.mxu0 0
    %350 = vmatpush.bf16.msra.mxu0 0
    %351 = vmatpush.bf16.msra.mxu0 0
    %352 = vmatpush.bf16.msra.mxu0 0
    %353 = vmatpush.bf16.msra.mxu0 %v170
    %354 = vmatpush.bf16.msra.mxu0 %v169
    %355 = vmatpush.bf16.msra.mxu0 %v168
    %356 = vmatpush.bf16.msra.mxu0 %v167
    %357 = vmatmul.bf16.gmra.mxu0 %v347
    %v358 = vpop.f32.mrf.mxu0
    %v359 = vadd.f32 %v149, %v358
    %v360 = vpop.f32.mrf.mxu0
    %361 = vdwg.mxu0
    %v362 = vxor.u32 %v359, 2147483648
    %v363 = vmul.f32 %v362, 1.442695
    %v364 = vpow.pop %v363
    %v365 = vadd.f32 %v364, 1.0
    %v366 = vrcp.pop %v365
    %v367 = vmul.f32 %v365, %v366
    %v368 = vsub.f32 1.0, %v367
    %v369 = vmul.f32 %v366, %v368
    %v370 = vadd.f32 %v366, %v369
    %vm371 = vweird.f32 %v365
    %vm372 = vweird.f32 %v366
    %vm373 = vmor %vm371, %vm372
    %v374 = vsel %vm373, %v366, %v370
    %v375 = vand.u32 2147483647, %v365
    %vm376 = vcmp.eq.f32.partialorder %v375, 8.507059e+37
    %v377 = vand.u32 %v365, 2147483648
    %v378 = vor.u32 1.1754944e-38, %v377
    %v379 = vsel %vm376, %v378, %v374
    %v380 = vmul.f32 1.0, %v379
    %v381 = vtanh.pop %v359
    %v382 = vmul.f32 %v380, %v226
    %384 = vrot.lane.b32.xlu0 %v381, 64
    %v385 = vpop.permute.xlu0 %384
    %v387 = vmul.f32 %v380, %v385
    %389 = vrot.lane.b32.xlu0 %v387, 32
    %v390 = vpop.permute.xlu0 %389
    %v392 = vadd.f32 %v382, %v390
    %v393 = vtanh.pop %v392
    %395 = vrot.lane.b32.xlu0 %v393, 64
    %v396 = vpop.permute.xlu0 %395
    %v398 = vmul.f32 %v380, %v396
    %400 = vrot.lane.b32.xlu0 %v398, 32
    %v401 = vpop.permute.xlu0 %400
    %404 = vrot.lane.b32.xlu0 %v337, 64
    %v405 = vpop.permute.xlu0 %404
    %v407 = vsel %vm136, %v401, %v405
    %v408 = vpack.c.bf16 %v407, %v407
    %v410 = vsel %vm175, %v408, 0
    %412 = vmatpush.bf16.msra.mxu0 0
    %413 = vmatpush.bf16.msra.mxu0 0
    %414 = vmatpush.bf16.msra.mxu0 0
    %415 = vmatpush.bf16.msra.mxu0 0
    %416 = vmatpush.bf16.msra.mxu0 %v276
    %417 = vmatpush.bf16.msra.mxu0 %v275
    %418 = vmatpush.bf16.msra.mxu0 %v274
    %419 = vmatpush.bf16.msra.mxu0 %v273
    %420 = vmatmul.bf16.gmra.mxu0 %v410
    %v421 = vpop.f32.mrf.mxu0
    %v422 = vadd.f32 %v255, %v421
    %v423 = vpop.f32.mrf.mxu0
    %424 = vdwg.mxu0
    %v425 = vxor.u32 %v422, 2147483648
    %v426 = vmul.f32 %v425, 1.442695
    %v427 = vpow.pop %v426
    %v428 = vadd.f32 %v427, 1.0
    %v429 = vrcp.pop %v428
    %v430 = vmul.f32 %v428, %v429
    %v431 = vsub.f32 1.0, %v430
    %v432 = vmul.f32 %v429, %v431
    %v433 = vadd.f32 %v429, %v432
    %vm434 = vweird.f32 %v428
    %vm435 = vweird.f32 %v429
    %vm436 = vmor %vm434, %vm435
    %v437 = vsel %vm436, %v429, %v433
    %v438 = vand.u32 2147483647, %v428
    %vm439 = vcmp.eq.f32.partialorder %v438, 8.507059e+37
    %v440 = vand.u32 %v428, 2147483648
    %v441 = vor.u32 1.1754944e-38, %v440
    %v442 = vsel %vm439, %v441, %v437
    %v443 = vmul.f32 1.0, %v442
    %v444 = vtanh.pop %v422
    %v445 = vmul.f32 %v443, %v331
    %447 = vrot.lane.b32.xlu0 %v444, 64
    %v448 = vpop.permute.xlu0 %447
    %v450 = vmul.f32 %v443, %v448
    %452 = vrot.lane.b32.xlu0 %v450, 32
    %v453 = vpop.permute.xlu0 %452
    %v455 = vadd.f32 %v445, %v453
    %v456 = vtanh.pop %v455
    %458 = vrot.lane.b32.xlu0 %v456, 64
    %v459 = vpop.permute.xlu0 %458
    %v461 = vmul.f32 %v443, %v459
    %v462 = vrot.slane %v398, 4
    %463 = vrot.lane.b32.xlu0 %v462, 64
    %v464 = vpop.permute.xlu0 %463
    %v466 = vsel %vm136, %v122, %v464
    %v467 = vpack.c.bf16 %v466, %v466
    %v469 = vrot.slane %v467, 2
    %v471 = vsel %vm175, %v469, 0
    %473 = vmatpush.bf16.msra.mxu0 0
    %474 = vmatpush.bf16.msra.mxu0 0
    %475 = vmatpush.bf16.msra.mxu0 0
    %476 = vmatpush.bf16.msra.mxu0 0
    %477 = vmatpush.bf16.msra.mxu0 %v170
    %478 = vmatpush.bf16.msra.mxu0 %v169
    %479 = vmatpush.bf16.msra.mxu0 %v168
    %480 = vmatpush.bf16.msra.mxu0 %v167
    %481 = vmatmul.bf16.gmra.mxu0 %v471
    %v482 = vpop.f32.mrf.mxu0
    %v483 = vadd.f32 %v149, %v482
    %v484 = vpop.f32.mrf.mxu0
    %485 = vdwg.mxu0
    %v486 = vxor.u32 %v483, 2147483648
    %v487 = vmul.f32 %v486, 1.442695
    %v488 = vpow.pop %v487
    %v489 = vadd.f32 %v488, 1.0
    %v490 = vrcp.pop %v489
    %v491 = vmul.f32 %v489, %v490
    %v492 = vsub.f32 1.0, %v491
    %v493 = vmul.f32 %v490, %v492
    %v494 = vadd.f32 %v490, %v493
    %vm495 = vweird.f32 %v489
    %vm496 = vweird.f32 %v490
    %vm497 = vmor %vm495, %vm496
    %v498 = vsel %vm497, %v490, %v494
    %v499 = vand.u32 2147483647, %v489
    %vm500 = vcmp.eq.f32.partialorder %v499, 8.507059e+37
    %v501 = vand.u32 %v489, 2147483648
    %v502 = vor.u32 1.1754944e-38, %v501
    %v503 = vsel %vm500, %v502, %v498
    %v504 = vmul.f32 1.0, %v503
    %v505 = vtanh.pop %v483
    %v506 = vmul.f32 %v504, %v392
    %508 = vrot.lane.b32.xlu0 %v505, 64
    %v509 = vpop.permute.xlu0 %508
    %v511 = vmul.f32 %v504, %v509
    %513 = vrot.lane.b32.xlu0 %v511, 32
    %v514 = vpop.permute.xlu0 %513
    %v516 = vadd.f32 %v506, %v514
    %v517 = vtanh.pop %v516
    %519 = vrot.lane.b32.xlu0 %v517, 64
    %v520 = vpop.permute.xlu0 %519
    %v522 = vmul.f32 %v504, %v520
    %524 = vrot.lane.b32.xlu0 %v522, 32
    %v525 = vpop.permute.xlu0 %524
    %528 = vrot.lane.b32.xlu0 %v461, 64
    %v529 = vpop.permute.xlu0 %528
    %v531 = vsel %vm136, %v525, %v529
    %v532 = vpack.c.bf16 %v531, %v531
    %v534 = vsel %vm175, %v532, 0
    %536 = vmatpush.bf16.msra.mxu0 0
    %537 = vmatpush.bf16.msra.mxu0 0
    %538 = vmatpush.bf16.msra.mxu0 0
    %539 = vmatpush.bf16.msra.mxu0 0
    %540 = vmatpush.bf16.msra.mxu0 %v276
    %541 = vmatpush.bf16.msra.mxu0 %v275
    %542 = vmatpush.bf16.msra.mxu0 %v274
    %543 = vmatpush.bf16.msra.mxu0 %v273
    %544 = vmatmul.bf16.gmra.mxu0 %v534
    %v545 = vpop.f32.mrf.mxu0
    %v546 = vadd.f32 %v255, %v545
    %v547 = vpop.f32.mrf.mxu0
    %548 = vdwg.mxu0
    %v549 = vxor.u32 %v546, 2147483648
    %v550 = vmul.f32 %v549, 1.442695
    %v551 = vpow.pop %v550
    %v552 = vadd.f32 %v551, 1.0
    %v553 = vrcp.pop %v552
    %v554 = vmul.f32 %v552, %v553
    %v555 = vsub.f32 1.0, %v554
    %v556 = vmul.f32 %v553, %v555
    %v557 = vadd.f32 %v553, %v556
    %vm558 = vweird.f32 %v552
    %vm559 = vweird.f32 %v553
    %vm560 = vmor %vm558, %vm559
    %v561 = vsel %vm560, %v553, %v557
    %v562 = vand.u32 2147483647, %v552
    %vm563 = vcmp.eq.f32.partialorder %v562, 8.507059e+37
    %v564 = vand.u32 %v552, 2147483648
    %v565 = vor.u32 1.1754944e-38, %v564
    %v566 = vsel %vm563, %v565, %v561
    %v567 = vmul.f32 1.0, %v566
    %v568 = vtanh.pop %v546
    %v569 = vmul.f32 %v567, %v455
    %571 = vrot.lane.b32.xlu0 %v568, 64
    %v572 = vpop.permute.xlu0 %571
    %v574 = vmul.f32 %v567, %v572
    %576 = vrot.lane.b32.xlu0 %v574, 32
    %v577 = vpop.permute.xlu0 %576
    %v579 = vadd.f32 %v569, %v577
    %v580 = vtanh.pop %v579
    %582 = vrot.lane.b32.xlu0 %v580, 64
    %v583 = vpop.permute.xlu0 %582
    %v585 = vmul.f32 %v567, %v583
    %v586 = vrot.slane %v522, 2
    %587 = vrot.lane.b32.xlu0 %v586, 64
    %v588 = vpop.permute.xlu0 %587
    %v590 = vsel %vm136, %v122, %v588
    %v591 = vpack.c.bf16 %v590, %v590
    %v593 = vrot.slane %v591, 3
    %v595 = vsel %vm175, %v593, 0
    %597 = vmatpush.bf16.msra.mxu0 0
    %598 = vmatpush.bf16.msra.mxu0 0
    %599 = vmatpush.bf16.msra.mxu0 0
    %600 = vmatpush.bf16.msra.mxu0 0
    %601 = vmatpush.bf16.msra.mxu0 %v170
    %602 = vmatpush.bf16.msra.mxu0 %v169
    %603 = vmatpush.bf16.msra.mxu0 %v168
    %604 = vmatpush.bf16.msra.mxu0 %v167
    %605 = vmatmul.bf16.gmra.mxu0 %v595
    %v606 = vpop.f32.mrf.mxu0
    %v607 = vadd.f32 %v149, %v606
    %v608 = vpop.f32.mrf.mxu0
    %609 = vdwg.mxu0
    %v610 = vxor.u32 %v607, 2147483648
    %v611 = vmul.f32 %v610, 1.442695
    %v612 = vpow.pop %v611
    %v613 = vadd.f32 %v612, 1.0
    %v614 = vrcp.pop %v613
    %v615 = vmul.f32 %v613, %v614
    %v616 = vsub.f32 1.0, %v615
    %v617 = vmul.f32 %v614, %v616
    %v618 = vadd.f32 %v614, %v617
    %vm619 = vweird.f32 %v613
    %vm620 = vweird.f32 %v614
    %vm621 = vmor %vm619, %vm620
    %v622 = vsel %vm621, %v614, %v618
    %v623 = vand.u32 2147483647, %v613
    %vm624 = vcmp.eq.f32.partialorder %v623, 8.507059e+37
    %v625 = vand.u32 %v613, 2147483648
    %v626 = vor.u32 1.1754944e-38, %v625
    %v627 = vsel %vm624, %v626, %v622
    %v628 = vmul.f32 1.0, %v627
    %v629 = vtanh.pop %v607
    %v630 = vmul.f32 %v628, %v516
    %632 = vrot.lane.b32.xlu0 %v629, 64
    %v633 = vpop.permute.xlu0 %632
    %v635 = vmul.f32 %v628, %v633
    %637 = vrot.lane.b32.xlu0 %v635, 32
    %v638 = vpop.permute.xlu0 %637
    %v640 = vadd.f32 %v630, %v638
    %v641 = vtanh.pop %v640
    %643 = vrot.lane.b32.xlu0 %v641, 64
    %v644 = vpop.permute.xlu0 %643
    %v646 = vmul.f32 %v628, %v644
    %648 = vrot.lane.b32.xlu0 %v646, 32
    %v649 = vpop.permute.xlu0 %648
    %652 = vrot.lane.b32.xlu0 %v585, 64
    %v653 = vpop.permute.xlu0 %652
    %v655 = vsel %vm136, %v649, %v653
    %v656 = vpack.c.bf16 %v655, %v655
    %v658 = vsel %vm175, %v656, 0
    %660 = vmatpush.bf16.msra.mxu0 0
    %661 = vmatpush.bf16.msra.mxu0 0
    %662 = vmatpush.bf16.msra.mxu0 0
    %663 = vmatpush.bf16.msra.mxu0 0
    %664 = vmatpush.bf16.msra.mxu0 %v276
    %665 = vmatpush.bf16.msra.mxu0 %v275
    %666 = vmatpush.bf16.msra.mxu0 %v274
    %667 = vmatpush.bf16.msra.mxu0 %v273
    %668 = vmatmul.bf16.gmra.mxu0 %v658
    %v669 = vpop.f32.mrf.mxu0
    %v670 = vadd.f32 %v255, %v669
    %v671 = vpop.f32.mrf.mxu0
    %672 = vdwg.mxu0
    %v673 = vxor.u32 %v670, 2147483648
    %v674 = vmul.f32 %v673, 1.442695
    %v675 = vpow.pop %v674
    %v676 = vadd.f32 %v675, 1.0
    %v677 = vrcp.pop %v676
    %v678 = vmul.f32 %v676, %v677
    %v679 = vsub.f32 1.0, %v678
    %v680 = vmul.f32 %v677, %v679
    %v681 = vadd.f32 %v677, %v680
    %vm682 = vweird.f32 %v676
    %vm683 = vweird.f32 %v677
    %vm684 = vmor %vm682, %vm683
    %v685 = vsel %vm684, %v677, %v681
    %v686 = vand.u32 2147483647, %v676
    %vm687 = vcmp.eq.f32.partialorder %v686, 8.507059e+37
    %v688 = vand.u32 %v676, 2147483648
    %v689 = vor.u32 1.1754944e-38, %v688
    %v690 = vsel %vm687, %v689, %v685
    %v691 = vmul.f32 1.0, %v690
    %v692 = vtanh.pop %v670
    %v693 = vmul.f32 %v691, %v579
    %695 = vrot.lane.b32.xlu0 %v692, 64
    %v696 = vpop.permute.xlu0 %695
    %v698 = vmul.f32 %v691, %v696
    %700 = vrot.lane.b32.xlu0 %v698, 32
    %v701 = vpop.permute.xlu0 %700
    %v703 = vadd.f32 %v693, %v701
    %v704 = vtanh.pop %v703
    %706 = vrot.lane.b32.xlu0 %v704, 64
    %v707 = vpop.permute.xlu0 %706
    %v709 = vmul.f32 %v691, %v707
    %710 = vrot.lane.b32.xlu0 %v646, 64
    %v711 = vpop.permute.xlu0 %710
    %v713 = vsel %vm136, %v124, %v711
    %v714 = vpack.c.bf16 %v713, %v713
    %v716 = vsel %vm175, %v714, 0
    %718 = vmatpush.bf16.msra.mxu0 0
    %719 = vmatpush.bf16.msra.mxu0 0
    %720 = vmatpush.bf16.msra.mxu0 0
    %721 = vmatpush.bf16.msra.mxu0 0
    %722 = vmatpush.bf16.msra.mxu0 %v170
    %723 = vmatpush.bf16.msra.mxu0 %v169
    %724 = vmatpush.bf16.msra.mxu0 %v168
    %725 = vmatpush.bf16.msra.mxu0 %v167
    %726 = vmatmul.bf16.gmra.mxu0 %v716
    %v727 = vpop.f32.mrf.mxu0
    %v728 = vadd.f32 %v149, %v727
    %v729 = vpop.f32.mrf.mxu0
    %730 = vdwg.mxu0
    %v731 = vxor.u32 %v728, 2147483648
    %v732 = vmul.f32 %v731, 1.442695
    %v733 = vpow.pop %v732
    %v734 = vadd.f32 %v733, 1.0
    %v735 = vrcp.pop %v734
    %v736 = vmul.f32 %v734, %v735
    %v737 = vsub.f32 1.0, %v736
    %v738 = vmul.f32 %v735, %v737
    %v739 = vadd.f32 %v735, %v738
    %vm740 = vweird.f32 %v734
    %vm741 = vweird.f32 %v735
    %vm742 = vmor %vm740, %vm741
    %v743 = vsel %vm742, %v735, %v739
    %v744 = vand.u32 2147483647, %v734
    %vm745 = vcmp.eq.f32.partialorder %v744, 8.507059e+37
    %v746 = vand.u32 %v734, 2147483648
    %v747 = vor.u32 1.1754944e-38, %v746
    %v748 = vsel %vm745, %v747, %v743
    %v749 = vmul.f32 1.0, %v748
    %v750 = vtanh.pop %v728
    %v751 = vmul.f32 %v749, %v640
    %753 = vrot.lane.b32.xlu0 %v750, 64
    %v754 = vpop.permute.xlu0 %753
    %v756 = vmul.f32 %v749, %v754
    %758 = vrot.lane.b32.xlu0 %v756, 32
    %v759 = vpop.permute.xlu0 %758
    %v761 = vadd.f32 %v751, %v759
    %v762 = vtanh.pop %v761
    %764 = vrot.lane.b32.xlu0 %v762, 64
    %v765 = vpop.permute.xlu0 %764
    %v767 = vmul.f32 %v749, %v765
    %769 = vrot.lane.b32.xlu0 %v767, 32
    %v770 = vpop.permute.xlu0 %769
    %773 = vrot.lane.b32.xlu0 %v709, 64
    %v774 = vpop.permute.xlu0 %773
    %v776 = vsel %vm136, %v770, %v774
    %v777 = vpack.c.bf16 %v776, %v776
    %v779 = vsel %vm175, %v777, 0
    %781 = vmatpush.bf16.msra.mxu0 0
    %782 = vmatpush.bf16.msra.mxu0 0
    %783 = vmatpush.bf16.msra.mxu0 0
    %784 = vmatpush.bf16.msra.mxu0 0
    %785 = vmatpush.bf16.msra.mxu0 %v276
    %786 = vmatpush.bf16.msra.mxu0 %v275
    %787 = vmatpush.bf16.msra.mxu0 %v274
    %788 = vmatpush.bf16.msra.mxu0 %v273
    %789 = vmatmul.bf16.gmra.mxu0 %v779
    %v790 = vpop.f32.mrf.mxu0
    %v791 = vadd.f32 %v255, %v790
    %v792 = vpop.f32.mrf.mxu0
    %793 = vdwg.mxu0
    %v794 = vxor.u32 %v791, 2147483648
    %v795 = vmul.f32 %v794, 1.442695
    %v796 = vpow.pop %v795
    %v797 = vadd.f32 %v796, 1.0
    %v798 = vrcp.pop %v797
    %v799 = vmul.f32 %v797, %v798
    %v800 = vsub.f32 1.0, %v799
    %v801 = vmul.f32 %v798, %v800
    %v802 = vadd.f32 %v798, %v801
    %vm803 = vweird.f32 %v797
    %vm804 = vweird.f32 %v798
    %vm805 = vmor %vm803, %vm804
    %v806 = vsel %vm805, %v798, %v802
    %v807 = vand.u32 2147483647, %v797
    %vm808 = vcmp.eq.f32.partialorder %v807, 8.507059e+37
    %v809 = vand.u32 %v797, 2147483648
    %v810 = vor.u32 1.1754944e-38, %v809
    %v811 = vsel %vm808, %v810, %v806
    %v812 = vmul.f32 1.0, %v811
    %v813 = vtanh.pop %v791
    %v814 = vmul.f32 %v812, %v703
    %816 = vrot.lane.b32.xlu0 %v813, 64
    %v817 = vpop.permute.xlu0 %816
    %v819 = vmul.f32 %v812, %v817
    %821 = vrot.lane.b32.xlu0 %v819, 32
    %v822 = vpop.permute.xlu0 %821
    %v824 = vadd.f32 %v814, %v822
    %v825 = vtanh.pop %v824
    %827 = vrot.lane.b32.xlu0 %v825, 64
    %v828 = vpop.permute.xlu0 %827
    %v830 = vmul.f32 %v812, %v828
    %v831 = vrot.slane %v767, 6
    %832 = vrot.lane.b32.xlu0 %v831, 64
    %v833 = vpop.permute.xlu0 %832
    %v835 = vsel %vm136, %v124, %v833
    %v836 = vpack.c.bf16 %v835, %v835
    %v838 = vrot.slane %v836, 1
    %v840 = vsel %vm175, %v838, 0
    %842 = vmatpush.bf16.msra.mxu0 0
    %843 = vmatpush.bf16.msra.mxu0 0
    %844 = vmatpush.bf16.msra.mxu0 0
    %845 = vmatpush.bf16.msra.mxu0 0
    %846 = vmatpush.bf16.msra.mxu0 %v170
    %847 = vmatpush.bf16.msra.mxu0 %v169
    %848 = vmatpush.bf16.msra.mxu0 %v168
    %849 = vmatpush.bf16.msra.mxu0 %v167
    %850 = vmatmul.bf16.gmra.mxu0 %v840
    %v851 = vpop.f32.mrf.mxu0
    %v852 = vadd.f32 %v149, %v851
    %v853 = vpop.f32.mrf.mxu0
    %854 = vdwg.mxu0
    %v855 = vxor.u32 %v852, 2147483648
    %v856 = vmul.f32 %v855, 1.442695
    %v857 = vpow.pop %v856
    %v858 = vadd.f32 %v857, 1.0
    %v859 = vrcp.pop %v858
    %v860 = vmul.f32 %v858, %v859
    %v861 = vsub.f32 1.0, %v860
    %v862 = vmul.f32 %v859, %v861
    %v863 = vadd.f32 %v859, %v862
    %vm864 = vweird.f32 %v858
    %vm865 = vweird.f32 %v859
    %vm866 = vmor %vm864, %vm865
    %v867 = vsel %vm866, %v859, %v863
    %v868 = vand.u32 2147483647, %v858
    %vm869 = vcmp.eq.f32.partialorder %v868, 8.507059e+37
    %v870 = vand.u32 %v858, 2147483648
    %v871 = vor.u32 1.1754944e-38, %v870
    %v872 = vsel %vm869, %v871, %v867
    %v873 = vmul.f32 1.0, %v872
    %v874 = vtanh.pop %v852
    %v875 = vmul.f32 %v873, %v761
    %877 = vrot.lane.b32.xlu0 %v874, 64
    %v878 = vpop.permute.xlu0 %877
    %v880 = vmul.f32 %v873, %v878
    %882 = vrot.lane.b32.xlu0 %v880, 32
    %v883 = vpop.permute.xlu0 %882
    %v885 = vadd.f32 %v875, %v883
    %v886 = vtanh.pop %v885
    %888 = vrot.lane.b32.xlu0 %v886, 64
    %v889 = vpop.permute.xlu0 %888
    %v891 = vmul.f32 %v873, %v889
    %893 = vrot.lane.b32.xlu0 %v891, 32
    %v894 = vpop.permute.xlu0 %893
    %897 = vrot.lane.b32.xlu0 %v830, 64
    %v898 = vpop.permute.xlu0 %897
    %v900 = vsel %vm136, %v894, %v898
    %v901 = vpack.c.bf16 %v900, %v900
    %v903 = vsel %vm175, %v901, 0
    %905 = vmatpush.bf16.msra.mxu0 0
    %906 = vmatpush.bf16.msra.mxu0 0
    %907 = vmatpush.bf16.msra.mxu0 0
    %908 = vmatpush.bf16.msra.mxu0 0
    %909 = vmatpush.bf16.msra.mxu0 %v276
    %910 = vmatpush.bf16.msra.mxu0 %v275
    %911 = vmatpush.bf16.msra.mxu0 %v274
    %912 = vmatpush.bf16.msra.mxu0 %v273
    %913 = vmatmul.bf16.gmra.mxu0 %v903
    %v914 = vpop.f32.mrf.mxu0
    %v915 = vadd.f32 %v255, %v914
    %v916 = vpop.f32.mrf.mxu0
    %917 = vdwg.mxu0
    %v918 = vxor.u32 %v915, 2147483648
    %v919 = vmul.f32 %v918, 1.442695
    %v920 = vpow.pop %v919
    %v921 = vadd.f32 %v920, 1.0
    %v922 = vrcp.pop %v921
    %v923 = vmul.f32 %v921, %v922
    %v924 = vsub.f32 1.0, %v923
    %v925 = vmul.f32 %v922, %v924
    %v926 = vadd.f32 %v922, %v925
    %vm927 = vweird.f32 %v921
    %vm928 = vweird.f32 %v922
    %vm929 = vmor %vm927, %vm928
    %v930 = vsel %vm929, %v922, %v926
    %v931 = vand.u32 2147483647, %v921
    %vm932 = vcmp.eq.f32.partialorder %v931, 8.507059e+37
    %v933 = vand.u32 %v921, 2147483648
    %v934 = vor.u32 1.1754944e-38, %v933
    %v935 = vsel %vm932, %v934, %v930
    %v936 = vmul.f32 1.0, %v935
    %v937 = vtanh.pop %v915
    %v938 = vmul.f32 %v936, %v824
    %940 = vrot.lane.b32.xlu0 %v937, 64
    %v941 = vpop.permute.xlu0 %940
    %v943 = vmul.f32 %v936, %v941
    %945 = vrot.lane.b32.xlu0 %v943, 32
    %v946 = vpop.permute.xlu0 %945
    %v948 = vadd.f32 %v938, %v946
    %v949 = vtanh.pop %v948
    %951 = vrot.lane.b32.xlu0 %v949, 64
    %v952 = vpop.permute.xlu0 %951
    %v954 = vmul.f32 %v936, %v952
    %v955 = vrot.slane %v891, 4
    %956 = vrot.lane.b32.xlu0 %v955, 64
    %v957 = vpop.permute.xlu0 %956
    %v959 = vsel %vm136, %v124, %v957
    %v960 = vpack.c.bf16 %v959, %v959
    %v962 = vrot.slane %v960, 2
    %v964 = vsel %vm175, %v962, 0
    %966 = vmatpush.bf16.msra.mxu0 0
    %967 = vmatpush.bf16.msra.mxu0 0
    %968 = vmatpush.bf16.msra.mxu0 0
    %969 = vmatpush.bf16.msra.mxu0 0
    %970 = vmatpush.bf16.msra.mxu0 %v170
    %971 = vmatpush.bf16.msra.mxu0 %v169
    %972 = vmatpush.bf16.msra.mxu0 %v168
    %973 = vmatpush.bf16.msra.mxu0 %v167
    %974 = vmatmul.bf16.gmra.mxu0 %v964
    %v975 = vpop.f32.mrf.mxu0
    %v976 = vadd.f32 %v149, %v975
    %v977 = vpop.f32.mrf.mxu0
    %978 = vdwg.mxu0
    %v979 = vxor.u32 %v976, 2147483648
    %v980 = vmul.f32 %v979, 1.442695
    %v981 = vpow.pop %v980
    %v982 = vadd.f32 %v981, 1.0
    %v983 = vrcp.pop %v982
    %v984 = vmul.f32 %v982, %v983
    %v985 = vsub.f32 1.0, %v984
    %v986 = vmul.f32 %v983, %v985
    %v987 = vadd.f32 %v983, %v986
    %vm988 = vweird.f32 %v982
    %vm989 = vweird.f32 %v983
    %vm990 = vmor %vm988, %vm989
    %v991 = vsel %vm990, %v983, %v987
    %v992 = vand.u32 2147483647, %v982
    %vm993 = vcmp.eq.f32.partialorder %v992, 8.507059e+37
    %v994 = vand.u32 %v982, 2147483648
    %v995 = vor.u32 1.1754944e-38, %v994
    %v996 = vsel %vm993, %v995, %v991
    %v997 = vmul.f32 1.0, %v996
    %v998 = vtanh.pop %v976
    %v999 = vmul.f32 %v997, %v885
    %1001 = vrot.lane.b32.xlu0 %v998, 64
    %v1002 = vpop.permute.xlu0 %1001
    %v1004 = vmul.f32 %v997, %v1002
    %1006 = vrot.lane.b32.xlu0 %v1004, 32
    %v1007 = vpop.permute.xlu0 %1006
    %v1009 = vadd.f32 %v999, %v1007
    %v1010 = vtanh.pop %v1009
    %1012 = vrot.lane.b32.xlu0 %v1010, 64
    %v1013 = vpop.permute.xlu0 %1012
    %v1015 = vmul.f32 %v997, %v1013
    %1017 = vrot.lane.b32.xlu0 %v1015, 32
    %v1018 = vpop.permute.xlu0 %1017
    %1021 = vrot.lane.b32.xlu0 %v954, 64
    %v1022 = vpop.permute.xlu0 %1021
    %v1024 = vsel %vm136, %v1018, %v1022
    %v1025 = vpack.c.bf16 %v1024, %v1024
    %v1027 = vsel %vm175, %v1025, 0
    %1029 = vmatpush.bf16.msra.mxu0 0
    %1030 = vmatpush.bf16.msra.mxu0 0
    %1031 = vmatpush.bf16.msra.mxu0 0
    %1032 = vmatpush.bf16.msra.mxu0 0
    %1033 = vmatpush.bf16.msra.mxu0 %v276
    %1034 = vmatpush.bf16.msra.mxu0 %v275
    %1035 = vmatpush.bf16.msra.mxu0 %v274
    %1036 = vmatpush.bf16.msra.mxu0 %v273
    %1037 = vmatmul.bf16.gmra.mxu0 %v1027
    %v1038 = vpop.f32.mrf.mxu0
    %v1039 = vadd.f32 %v255, %v1038
    %v1040 = vpop.f32.mrf.mxu0
    %1041 = vdwg.mxu0
    %v1042 = vxor.u32 %v1039, 2147483648
    %v1043 = vmul.f32 %v1042, 1.442695
    %v1044 = vpow.pop %v1043
    %v1045 = vadd.f32 %v1044, 1.0
    %v1046 = vrcp.pop %v1045
    %v1047 = vmul.f32 %v1045, %v1046
    %v1048 = vsub.f32 1.0, %v1047
    %v1049 = vmul.f32 %v1046, %v1048
    %v1050 = vadd.f32 %v1046, %v1049
    %vm1051 = vweird.f32 %v1045
    %vm1052 = vweird.f32 %v1046
    %vm1053 = vmor %vm1051, %vm1052
    %v1054 = vsel %vm1053, %v1046, %v1050
    %v1055 = vand.u32 2147483647, %v1045
    %vm1056 = vcmp.eq.f32.partialorder %v1055, 8.507059e+37
    %v1057 = vand.u32 %v1045, 2147483648
    %v1058 = vor.u32 1.1754944e-38, %v1057
    %v1059 = vsel %vm1056, %v1058, %v1054
    %v1060 = vmul.f32 1.0, %v1059
    %v1061 = vtanh.pop %v1039
    %v1062 = vmul.f32 %v1060, %v948
    %1064 = vrot.lane.b32.xlu0 %v1061, 64
    %v1065 = vpop.permute.xlu0 %1064
    %v1067 = vmul.f32 %v1060, %v1065
    %1069 = vrot.lane.b32.xlu0 %v1067, 32
    %v1070 = vpop.permute.xlu0 %1069
    %v1072 = vadd.f32 %v1062, %v1070
    %v1073 = vtanh.pop %v1072
    %1075 = vrot.lane.b32.xlu0 %v1073, 64
    %v1076 = vpop.permute.xlu0 %1075
    %v1078 = vmul.f32 %v1060, %v1076
    %v1079 = vrot.slane %v1015, 2
    %1080 = vrot.lane.b32.xlu0 %v1079, 64
    %v1081 = vpop.permute.xlu0 %1080
    %v1083 = vsel %vm136, %v124, %v1081
    %v1084 = vpack.c.bf16 %v1083, %v1083
    %v1086 = vrot.slane %v1084, 3
    %v1088 = vsel %vm175, %v1086, 0
    %1090 = vmatpush.bf16.msra.mxu0 0
    %1091 = vmatpush.bf16.msra.mxu0 0
    %1092 = vmatpush.bf16.msra.mxu0 0
    %1093 = vmatpush.bf16.msra.mxu0 0
    %1094 = vmatpush.bf16.msra.mxu0 %v170
    %1095 = vmatpush.bf16.msra.mxu0 %v169
    %1096 = vmatpush.bf16.msra.mxu0 %v168
    %1097 = vmatpush.bf16.msra.mxu0 %v167
    %1098 = vmatmul.bf16.gmra.mxu0 %v1088
    %v1099 = vpop.f32.mrf.mxu0
    %v1100 = vadd.f32 %v149, %v1099
    %v1101 = vpop.f32.mrf.mxu0
    %1102 = vdwg.mxu0
    %v1103 = vxor.u32 %v1100, 2147483648
    %v1104 = vmul.f32 %v1103, 1.442695
    %v1105 = vpow.pop %v1104
    %v1106 = vadd.f32 %v1105, 1.0
    %v1107 = vrcp.pop %v1106
    %v1108 = vmul.f32 %v1106, %v1107
    %v1109 = vsub.f32 1.0, %v1108
    %v1110 = vmul.f32 %v1107, %v1109
    %v1111 = vadd.f32 %v1107, %v1110
    %vm1112 = vweird.f32 %v1106
    %vm1113 = vweird.f32 %v1107
    %vm1114 = vmor %vm1112, %vm1113
    %v1115 = vsel %vm1114, %v1107, %v1111
    %v1116 = vand.u32 2147483647, %v1106
    %vm1117 = vcmp.eq.f32.partialorder %v1116, 8.507059e+37
    %v1118 = vand.u32 %v1106, 2147483648
    %v1119 = vor.u32 1.1754944e-38, %v1118
    %v1120 = vsel %vm1117, %v1119, %v1115
    %v1121 = vmul.f32 1.0, %v1120
    %v1122 = vtanh.pop %v1100
    %v1123 = vmul.f32 %v1121, %v1009
    %1125 = vrot.lane.b32.xlu0 %v1122, 64
    %v1126 = vpop.permute.xlu0 %1125
    %v1128 = vmul.f32 %v1121, %v1126
    %1130 = vrot.lane.b32.xlu0 %v1128, 32
    %v1131 = vpop.permute.xlu0 %1130
    %v1133 = vadd.f32 %v1123, %v1131
    %v1134 = vtanh.pop %v1133
    %1136 = vrot.lane.b32.xlu0 %v1134, 64
    %v1137 = vpop.permute.xlu0 %1136
    %v1139 = vmul.f32 %v1121, %v1137
    %1141 = vrot.lane.b32.xlu0 %v1139, 32
    %v1142 = vpop.permute.xlu0 %1141
    %1145 = vrot.lane.b32.xlu0 %v1078, 64
    %v1146 = vpop.permute.xlu0 %1145
    %v1148 = vsel %vm136, %v1142, %v1146
    %v1149 = vpack.c.bf16 %v1148, %v1148
    %v1151 = vsel %vm175, %v1149, 0
    %1153 = vmatpush.bf16.msra.mxu0 0
    %1154 = vmatpush.bf16.msra.mxu0 0
    %1155 = vmatpush.bf16.msra.mxu0 0
    %1156 = vmatpush.bf16.msra.mxu0 0
    %1157 = vmatpush.bf16.msra.mxu0 %v276
    %1158 = vmatpush.bf16.msra.mxu0 %v275
    %1159 = vmatpush.bf16.msra.mxu0 %v274
    %1160 = vmatpush.bf16.msra.mxu0 %v273
    %1161 = vmatmul.bf16.gmra.mxu0 %v1151
    %v1162 = vpop.f32.mrf.mxu0
    %v1163 = vadd.f32 %v255, %v1162
    %v1164 = vpop.f32.mrf.mxu0
    %1165 = vdwg.mxu0
    %v1166 = vxor.u32 %v1163, 2147483648
    %v1167 = vmul.f32 %v1166, 1.442695
    %v1168 = vpow.pop %v1167
    %v1169 = vadd.f32 %v1168, 1.0
    %v1170 = vrcp.pop %v1169
    %v1171 = vmul.f32 %v1169, %v1170
    %v1172 = vsub.f32 1.0, %v1171
    %v1173 = vmul.f32 %v1170, %v1172
    %v1174 = vadd.f32 %v1170, %v1173
    %vm1175 = vweird.f32 %v1169
    %vm1176 = vweird.f32 %v1170
    %vm1177 = vmor %vm1175, %vm1176
    %v1178 = vsel %vm1177, %v1170, %v1174
    %v1179 = vand.u32 2147483647, %v1169
    %vm1180 = vcmp.eq.f32.partialorder %v1179, 8.507059e+37
    %v1181 = vand.u32 %v1169, 2147483648
    %v1182 = vor.u32 1.1754944e-38, %v1181
    %v1183 = vsel %vm1180, %v1182, %v1178
    %v1184 = vmul.f32 1.0, %v1183
    %v1185 = vtanh.pop %v1163
    %v1186 = vmul.f32 %v1184, %v1072
    %1188 = vrot.lane.b32.xlu0 %v1185, 64
    %v1189 = vpop.permute.xlu0 %1188
    %v1191 = vmul.f32 %v1184, %v1189
    %1193 = vrot.lane.b32.xlu0 %v1191, 32
    %v1194 = vpop.permute.xlu0 %1193
    %v1196 = vadd.f32 %v1186, %v1194
    %v1197 = vtanh.pop %v1196
    %1199 = vrot.lane.b32.xlu0 %v1197, 64
    %v1200 = vpop.permute.xlu0 %1199
    %v1202 = vmul.f32 %v1184, %v1200
    %vm1203 = vcmask 254976
    %1204 = vst.msk [vmem:[#allocation9] sm:$0x3] %vm1203, %v1142
    %1206 = vrot.lane.b32.xlu0 %v1133, 96
    %v1207 = vpop.permute.xlu0 %1206
    %1209 = vst.msk [vmem:[#allocation11] sm:$0x3] %vm1203, %v1207
    %1211 = vrot.lane.b32.xlu0 %v1202, 32
    %v1212 = vpop.permute.xlu0 %1211
    %1214 = vst.msk [vmem:[%s127] sm:$0x3] %vm1203, %v1212
    %1216 = vrot.lane.b32.xlu0 %v1196, 96
    %v1217 = vpop.permute.xlu0 %1216
    %1219 = vst.msk [vmem:[%s130] sm:$0x3] %vm1203, %v1217
    %v1220 = vrot.slane %v461, 6
    %v1222 = vrot.slane %v585, 4
    %v1224 = vrot.slane %v709, 2
    %v1226 = vrot.slane %v954, 6
    %v1228 = vrot.slane %v1078, 4
    %v1230 = vrot.slane %v1202, 2
    %v1232 = vsel %vm108, %v337, %v1220
    %vm1233 = vcmask 1043456
    %v1234 = vsel %vm1233, %v1232, %v1222
    %vm1235 = vcmask 1045504
    %v1236 = vsel %vm1235, %v1234, %v1224
    %v1237 = vsel %vm108, %v830, %v1226
    %v1238 = vsel %vm1233, %v1237, %v1228
    %v1239 = vsel %vm1235, %v1238, %v1230
    %v1240 = vpack.c.bf16 %v1239, %v1236
    %v1241 = vld [vmem:[%s7] sm:$0xf]
    %v1242 = vld [vmem:[%s7 + $0x4] sm:$0xf]
    %v1243 = vld [vmem:[%s7 + $0x8] sm:$0xf]
    %v1244 = vld [vmem:[%s7 + $0xc] sm:$0xf]
    %v1245 = vld [vmem:[%s8] sm:$0x1]
    %v1247 = vperm.slane %v1245, 0
    %1250 = vrot.lane.b32.xlu0 %v1240, 32
    %v1251 = vpop.permute.xlu0 %1250
    %v1256 = vunpack.c.l.b16 %v1241
    %v1257 = vunpack.c.l.b16 %v1242
    %v1258 = vunpack.c.l.b16 %v1243
    %v1259 = vunpack.c.l.b16 %v1244
    %v1260 = vpack.c.b16 %v1257, %v1256
    %v1261 = vpack.c.b16 %v1259, %v1258
    %v1265 = vsel %vm136, %v1251, 0
    %1267 = vmatpush.bf16.msra.mxu0 0
    %1268 = vmatpush.bf16.msra.mxu0 0
    %1269 = vmatpush.bf16.msra.mxu0 0
    %1270 = vmatpush.bf16.msra.mxu0 0
    %1271 = vmatpush.bf16.msra.mxu0 0
    %1272 = vmatpush.bf16.msra.mxu0 0
    %1273 = vmatpush.bf16.msra.mxu0 %v1261
    %1274 = vmatpush.bf16.msra.mxu0 %v1260
    %1275 = vmatmul.bf16.gmra.mxu0 %v1265
    %v1276 = vpop.f32.mrf.mxu0
    %v1277 = vadd.f32 %v1247, %v1276
    %v1278 = vpop.f32.mrf.mxu0
    %v1279 = vadd.f32 %v1247, %v1278
    %1280 = vdwg.mxu0
    %1281 = vst [vmem:[#allocation8] sm:$0xff] %v1277
    %1282 = vst [vmem:[#allocation8 + $0x8] sm:$0xff] %v1279
    // Predicated region
    $region54: #{tpu_custom_call.1} parent=1 // pred_check
      _
    $region55: #{tpu_custom_call.1} parent=1 // pred_check_branch
      %1284 = sbr.rel (0) target = $region57
    $region56: #{tpu_custom_call.1} parent=1 // pred_region
      %1286 = vsyncadd [#allocation4], 0
      %s1287 = sshll.u32 [#allocation8], 4
      %s1288 = int_to_ptr.vmem [resolvable:$true] %s1287
      %s1289 = sshll.u32 %s9, 4
      %s1290 = int_to_ptr.hbm [resolvable:$true] %s1289
      %1295 = dma.vmem_to_hbm [thread:$0]  %s1288, 256, %s1290, [#allocation4], 128, 128, 8
    $region57: #{tpu_custom_call.1} parent=1 // pred_fallthru
      _
    // Predicated region
    $region58: #{tpu_custom_call.1} parent=1 // pred_check
      _
    $region59: #{tpu_custom_call.1} parent=1 // pred_check_branch
      %1297 = sbr.rel (0) target = $region61
    $region60: #{tpu_custom_call.1} parent=1 // pred_region
      %1299 = vsyncadd [#allocation10], 0
      %s1300 = sshll.u32 [#allocation9], 4
      %s1301 = int_to_ptr.vmem [resolvable:$true] %s1300
      %s1302 = sshll.u32 %s10, 4
      %s1303 = int_to_ptr.hbm [resolvable:$true] %s1302
      %1308 = dma.vmem_to_hbm [thread:$0]  %s1301, 64, %s1303, [#allocation10], 32, 32, 2
    $region61: #{tpu_custom_call.1} parent=1 // pred_fallthru
      _
    // Predicated region
    $region62: #{tpu_custom_call.1} parent=1 // pred_check
      _
    $region63: #{tpu_custom_call.1} parent=1 // pred_check_branch
      %1310 = sbr.rel (0) target = $region65
    $region64: #{tpu_custom_call.1} parent=1 // pred_region
      %1312 = vsyncadd [#allocation10], 0
      %s1313 = sshll.u32 [#allocation11], 4
      %s1314 = int_to_ptr.vmem [resolvable:$true] %s1313
      %s1315 = sshll.u32 %s11, 4
      %s1316 = int_to_ptr.hbm [resolvable:$true] %s1315
      %1321 = dma.vmem_to_hbm [thread:$0]  %s1314, 64, %s1316, [#allocation10], 32, 32, 2
    $region65: #{tpu_custom_call.1} parent=1 // pred_fallthru
      _
    // Predicated region
    $region66: #{tpu_custom_call.1} parent=1 // pred_check
      _
    $region67: #{tpu_custom_call.1} parent=1 // pred_check_branch
      %1323 = sbr.rel (0) target = $region69
    $region68: #{tpu_custom_call.1} parent=1 // pred_region
      %1325 = dma.done [#allocation4], 256
    $region69: #{tpu_custom_call.1} parent=1 // pred_fallthru
      _
    // Predicated region
    $region70: #{tpu_custom_call.1} parent=1 // pred_check
      _
    $region71: #{tpu_custom_call.1} parent=1 // pred_check_branch
      %1327 = sbr.rel (0) target = $region73
    $region72: #{tpu_custom_call.1} parent=1 // pred_region
      %1329 = dma.done [#allocation10], 64
    $region73: #{tpu_custom_call.1} parent=1 // pred_fallthru
      _
    // Predicated region
    $region74: #{tpu_custom_call.1} parent=1 // pred_check
      _
    $region75: #{tpu_custom_call.1} parent=1 // pred_check_branch
      %1331 = sbr.rel (0) target = $region77
    $region76: #{tpu_custom_call.1} parent=1 // pred_region
      %1333 = dma.done [#allocation10], 64
    $region77: #{tpu_custom_call.1} parent=1 // pred_fallthru
      _
    %1334 = vsyncpa [#allocation3], 1
    %1335 = vsyncpa [#allocation6], 1
    %1336 = vsyncpa [#allocation4], 1
    %1337 = vsyncpa [#allocation10], 1

</llo_original>
